<compile_context>
chip_gen: v6e
topology: v6e:2x2x1
jax: 0.10.0
libtpu: 0.0.40
codegen_flags: <defaults>
</compile_context>

<pallas_src>
import functools
import math

import jax
import jax.numpy as jnp
from jax.experimental import pallas as pl
from jax.experimental.pallas import tpu as pltpu


def _shift_lanes(m, s):
    """r[:, p] = m[:, p + s] if 0 <= p + s < n else 0 (static s, zero fill)."""
    if s == 0:
        return m
    n = m.shape[-1]
    z = jnp.zeros(m.shape[:-1] + (abs(s),), m.dtype)
    if s > 0:
        return jnp.concatenate([m[:, s:], z], axis=-1)
    return jnp.concatenate([z, m[:, : n + s]], axis=-1)


def _shift_sublanes(v, s):
    """r[c, :] = v[c + s, :] if 0 <= c + s < C else 0 (static s, zero fill)."""
    if s == 0:
        return v
    c = v.shape[0]
    z = jnp.zeros((abs(s),) + v.shape[1:], v.dtype)
    if s > 0:
        return jnp.concatenate([v[s:, :], z], axis=0)
    return jnp.concatenate([z, v[: c + s, :]], axis=0)


def _tree_sum(xs):
    while len(xs) > 1:
        nxt = [xs[i] + xs[i + 1] for i in range(0, len(xs) - 1, 2)]
        if len(xs) % 2:
            nxt.append(xs[-1])
        xs = nxt
    return xs[0]


def cbam_kernel(w1_ref, w2_ref, x_ref, o_ref, *, H, W, K, k1):
    HW = H * W
    P = (K - 1) // 2
    p1 = (k1 - 1) // 2

    x = x_ref[0]                                        # (C, HW) f32, lane-dense
    C = x.shape[0]

    # ---------- Channel attention (ECA: Conv1d over the channel axis) ----------
    # Conv1d is linear (no bias): conv(avg) + conv(max) == conv(avg + max).
    pooled = (jnp.mean(x, axis=1, keepdims=True)
              + jnp.max(x, axis=1, keepdims=True))      # (C, 1)
    conv_c = jnp.zeros((C, 1), jnp.float32)
    for j in range(k1):                                 # k1 taps, zero-padded shifts
        conv_c = conv_c + w1_ref[j] * _shift_sublanes(pooled, j - p1)
    v_c = jax.nn.sigmoid(conv_c)                        # (C, 1)

    # ---------- Spatial attention (7x7 conv over [max, avg] channel maps) ----------
    xg = x * v_c                                        # (C, HW) channel-gated
    mx = jnp.max(xg, axis=0, keepdims=True)             # (1, HW)  (torch.cat order: max first)
    av = jnp.mean(xg, axis=0, keepdims=True)            # (1, HW)

    # Vertical (row) shifts: flat shift by di*W; zero fill == row zero padding.
    mx_v = [_shift_lanes(mx, (ki - P) * W) for ki in range(K)]
    av_v = [_shift_lanes(av, (ki - P) * W) for ki in range(K)]

    # Column index for horizontal-shift validity masks.
    colj = jax.lax.broadcasted_iota(jnp.int32, (1, HW), 1) % W

    terms = []
    for kj in range(K):
        dj = kj - P
        # Weighted vertical combine; two accumulators break the serial MAC chain.
        acc0 = jnp.zeros((1, HW), jnp.float32)
        acc1 = jnp.zeros((1, HW), jnp.float32)
        for ki in range(K):
            t = (w2_ref[ki * K + kj] * mx_v[ki]
                 + w2_ref[K * K + ki * K + kj] * av_v[ki])
            if ki % 2 == 0:
                acc0 = acc0 + t
            else:
                acc1 = acc1 + t
        inner = acc0 + acc1
        if dj != 0:
            inner = _shift_lanes(inner, dj)             # horizontal shift (lane rotate)
            inner = jnp.where((colj + dj >= 0) & (colj + dj < W), inner, 0.0)
        terms.append(inner)

    v_s = jax.nn.sigmoid(_tree_sum(terms))              # (1, HW)

    # ---------- Gate & store (lane-dense, unmasked stores) ----------
    # Recompute the channel gate from the VMEM ref so no full (C, HW)
    # intermediate needs to stay live across the spatial stage.
    o_ref[0] = ((x_ref[0] * v_c) * v_s).astype(o_ref.dtype)


def cbam_forward(x, w1, w2):
    """x: (B, C, H, W) f32.  w1: (1, 1, k1) Conv1d weight.  w2: (2, K, K) Conv2d weight."""
    B, C, H, W = x.shape
    k1 = w1.shape[-1]
    K = w2.shape[-1]
    HW = H * W

    x_flat = x.reshape(B, C, HW)                        # lane-dense view (free for NCHW)
    w1_flat = w1.reshape(k1).astype(jnp.float32)        # flat 1-D SMEM (tiny padding)
    w2_flat = w2.reshape(2 * K * K).astype(jnp.float32)

    out_flat = pl.pallas_call(
        functools.partial(cbam_kernel, H=H, W=W, K=K, k1=k1),
        out_shape=jax.ShapeDtypeStruct((B, C, HW), x.dtype),
        grid=(B,),
        in_specs=[
            pl.BlockSpec(memory_space=pltpu.MemorySpace.SMEM),   # ECA taps (scalars)
            pl.BlockSpec(memory_space=pltpu.MemorySpace.SMEM),   # 2*K*K spatial taps (scalars)
            pl.BlockSpec((1, C, HW), lambda b: (b, 0, 0)),       # one image per grid step
        ],
        out_specs=pl.BlockSpec((1, C, HW), lambda b: (b, 0, 0)),
        compiler_params=pltpu.CompilerParams(dimension_semantics=("parallel",)),
    )(w1_flat, w2_flat, x_flat)
    return out_flat.reshape(B, C, H, W)


def cbam_reference(x, w1, w2):
    """Pure-JAX reference matching the PyTorch forward semantics."""
    k1 = w1.shape[-1]
    p1 = (k1 - 1) // 2
    avg_c = jnp.mean(x, axis=(2, 3))                    # (B, C)
    max_c = jnp.max(x, axis=(2, 3))                     # (B, C)

    def conv1d(v):
        return jax.lax.conv_general_dilated(
            v[:, None, :], w1, window_strides=(1,), padding=[(p1, p1)],
            dimension_numbers=("NCH", "OIH", "NCH"))[:, 0, :]

    v_c = jax.nn.sigmoid(conv1d(avg_c) + conv1d(max_c))  # (B, C)
    x_ca = x * v_c[:, :, None, None]

    max_s = jnp.max(x_ca, axis=1, keepdims=True)
    avg_s = jnp.mean(x_ca, axis=1, keepdims=True)
    cat = jnp.concatenate([max_s, avg_s], axis=1)        # (B, 2, H, W)
    K = w2.shape[-1]
    P = (K - 1) // 2
    v_s = jax.lax.conv_general_dilated(
        cat, w2[None], window_strides=(1, 1), padding=[(P, P), (P, P)],
        dimension_numbers=("NCHW", "OIHW", "NCHW"))      # (B, 1, H, W)
    return x_ca * jax.nn.sigmoid(v_s)


if __name__ == "__main__":
    B, C, H, W = 2, 16, 16, 16
    gamma, b = 2, 1
    # ECA kernel-size formula from ChannelAttentionConv.__init__  (C=16 -> k1=3)
    k1 = int(abs((math.log(C, 2) + b) / gamma))
    k1 = k1 if k1 % 2 else k1 + 1
    K2 = 7  # spatial_attention_kernel

    key = jax.random.PRNGKey(0)
    kx, kw1, kw2 = jax.random.split(key, 3)
    x = jax.random.normal(kx, (B, C, H, W), jnp.float32)
    w1 = jax.random.normal(kw1, (1, 1, k1), jnp.float32) * (1.0 / math.sqrt(k1))
    w2 = jax.random.normal(kw2, (2, K2, K2), jnp.float32) * (1.0 / math.sqrt(2 * K2 * K2))

    out = jax.block_until_ready(jax.jit(cbam_forward)(x, w1, w2))
    ref = jax.block_until_ready(cbam_reference(x, w1, w2))

    assert out.shape == x.shape and out.dtype == x.dtype
    err = float(jnp.max(jnp.abs(out - ref)))
    if err < 1e-4:
        print("KERNEL_OK")
    else:
        print(f"MISMATCH max_abs_err={err}")
</pallas_src>

<mosaic_0001>
module attributes {stable_mosaic.version = 11 : i64} {
  func.func @cbam_kernel(%arg0: i32, %arg1: memref<3xf32, #tpu.memory_space<smem>>, %arg2: memref<98xf32, #tpu.memory_space<smem>>, %arg3: memref<1x16x256xf32, #tpu.memory_space<vmem>>, %arg4: memref<1x16x256xf32, #tpu.memory_space<vmem>>) attributes {dimension_semantics = [#tpu.dimension_semantics<parallel>], iteration_bounds = array<i64: 2>, scalar_prefetch = 0 : i64, scratch_operands = 0 : i64, tpu.core_type = #tpu.core_type<tc>, window_params = [{transform_indices = @transform_0, window_bounds = array<i64: 3>}, {transform_indices = @transform_1, window_bounds = array<i64: 98>}, {transform_indices = @transform_2, window_bounds = array<i64: 1, 16, 256>}, {transform_indices = @transform_3, window_bounds = array<i64: 1, 16, 256>}]} {
    %c0 = arith.constant 0 : index
    %c0_0 = arith.constant 0 : index
    %c0_1 = arith.constant 0 : index
    %0 = vector.load %arg3[%c0, %c0_0, %c0_1] : memref<1x16x256xf32, #tpu.memory_space<vmem>>, vector<1x16x256xf32>
    %1 = vector.shape_cast %0 : vector<1x16x256xf32> to vector<16x256xf32>
    %cst = arith.constant dense<0.000000e+00> : vector<16xf32>
    %2 = vector.multi_reduction <add>, %1, %cst [1] : vector<16x256xf32> to vector<16xf32>
    %3 = vector.shape_cast %2 : vector<16xf32> to vector<16x1xf32>
    %cst_2 = arith.constant 2.560000e+02 : f32
    %4 = vector.broadcast %cst_2 : f32 to vector<16x1xf32>
    %5 = arith.divf %3, %4 : vector<16x1xf32>
    %cst_3 = arith.constant dense<0xFF800000> : vector<16xf32>
    %6 = vector.multi_reduction <maximumf>, %1, %cst_3 [1] : vector<16x256xf32> to vector<16xf32>
    %7 = vector.shape_cast %6 : vector<16xf32> to vector<16x1xf32>
    %8 = arith.addf %5, %7 : vector<16x1xf32>
    %cst_4 = arith.constant 0.000000e+00 : f32
    %9 = vector.broadcast %cst_4 : f32 to vector<16x1xf32>
    %c0_5 = arith.constant 0 : index
    %10 = memref.load %arg1[%c0_5] : memref<3xf32, #tpu.memory_space<smem>>
    %cst_6 = arith.constant 0.000000e+00 : f32
    %11 = vector.broadcast %cst_6 : f32 to vector<1x1xf32>
    %12 = vector.extract_strided_slice %8 {offsets = [0, 0], sizes = [15, 1], strides = [1, 1]} : vector<16x1xf32> to vector<15x1xf32>
    %13 = tpu.concatenate %11, %12 in 0 : vector<1x1xf32>, vector<15x1xf32> -> vector<16x1xf32>
    %14 = vector.broadcast %10 : f32 to vector<16x1xf32>
    %15 = arith.mulf %14, %13 : vector<16x1xf32>
    %16 = arith.addf %9, %15 : vector<16x1xf32>
    %c1 = arith.constant 1 : index
    %17 = memref.load %arg1[%c1] : memref<3xf32, #tpu.memory_space<smem>>
    %18 = vector.broadcast %17 : f32 to vector<16x1xf32>
    %19 = arith.mulf %18, %8 : vector<16x1xf32>
    %20 = arith.addf %16, %19 : vector<16x1xf32>
    %c2 = arith.constant 2 : index
    %21 = memref.load %arg1[%c2] : memref<3xf32, #tpu.memory_space<smem>>
    %cst_7 = arith.constant 0.000000e+00 : f32
    %22 = vector.broadcast %cst_7 : f32 to vector<1x1xf32>
    %23 = vector.extract_strided_slice %8 {offsets = [1, 0], sizes = [15, 1], strides = [1, 1]} : vector<16x1xf32> to vector<15x1xf32>
    %24 = tpu.concatenate %23, %22 in 0 : vector<15x1xf32>, vector<1x1xf32> -> vector<16x1xf32>
    %25 = vector.broadcast %21 : f32 to vector<16x1xf32>
    %26 = arith.mulf %25, %24 : vector<16x1xf32>
    %27 = arith.addf %20, %26 : vector<16x1xf32>
    %28 = arith.negf %27 : vector<16x1xf32>
    %29 = math.exp %28 : vector<16x1xf32>
    %cst_8 = arith.constant 1.000000e+00 : f32
    %30 = vector.broadcast %cst_8 : f32 to vector<16x1xf32>
    %31 = arith.addf %30, %29 : vector<16x1xf32>
    %32 = arith.divf %30, %31 : vector<16x1xf32>
    %33 = vector.broadcast %32 : vector<16x1xf32> to vector<16x256xf32>
    %34 = arith.mulf %1, %33 : vector<16x256xf32>
    %cst_9 = arith.constant dense<0xFF800000> : vector<256xf32>
    %35 = vector.multi_reduction <maximumf>, %34, %cst_9 [0] : vector<16x256xf32> to vector<256xf32>
    %36 = vector.shape_cast %35 : vector<256xf32> to vector<1x256xf32>
    %cst_10 = arith.constant dense<0.000000e+00> : vector<256xf32>
    %37 = vector.multi_reduction <add>, %34, %cst_10 [0] : vector<16x256xf32> to vector<256xf32>
    %38 = vector.shape_cast %37 : vector<256xf32> to vector<1x256xf32>
    %cst_11 = arith.constant 1.600000e+01 : f32
    %39 = vector.broadcast %cst_11 : f32 to vector<1x256xf32>
    %40 = arith.divf %38, %39 : vector<1x256xf32>
    %cst_12 = arith.constant 0.000000e+00 : f32
    %41 = vector.broadcast %cst_12 : f32 to vector<1x48xf32>
    %42 = vector.extract_strided_slice %36 {offsets = [0, 0], sizes = [1, 208], strides = [1, 1]} : vector<1x256xf32> to vector<1x208xf32>
    %43 = tpu.concatenate %41, %42 in 1 : vector<1x48xf32>, vector<1x208xf32> -> vector<1x256xf32>
    %cst_13 = arith.constant 0.000000e+00 : f32
    %44 = vector.broadcast %cst_13 : f32 to vector<1x32xf32>
    %45 = vector.extract_strided_slice %36 {offsets = [0, 0], sizes = [1, 224], strides = [1, 1]} : vector<1x256xf32> to vector<1x224xf32>
    %46 = tpu.concatenate %44, %45 in 1 : vector<1x32xf32>, vector<1x224xf32> -> vector<1x256xf32>
    %cst_14 = arith.constant 0.000000e+00 : f32
    %47 = vector.broadcast %cst_14 : f32 to vector<1x16xf32>
    %48 = vector.extract_strided_slice %36 {offsets = [0, 0], sizes = [1, 240], strides = [1, 1]} : vector<1x256xf32> to vector<1x240xf32>
    %49 = tpu.concatenate %47, %48 in 1 : vector<1x16xf32>, vector<1x240xf32> -> vector<1x256xf32>
    %cst_15 = arith.constant 0.000000e+00 : f32
    %50 = vector.broadcast %cst_15 : f32 to vector<1x16xf32>
    %51 = vector.extract_strided_slice %36 {offsets = [0, 16], sizes = [1, 240], strides = [1, 1]} : vector<1x256xf32> to vector<1x240xf32>
    %52 = tpu.concatenate %51, %50 in 1 : vector<1x240xf32>, vector<1x16xf32> -> vector<1x256xf32>
    %cst_16 = arith.constant 0.000000e+00 : f32
    %53 = vector.broadcast %cst_16 : f32 to vector<1x32xf32>
    %54 = vector.extract_strided_slice %36 {offsets = [0, 32], sizes = [1, 224], strides = [1, 1]} : vector<1x256xf32> to vector<1x224xf32>
    %55 = tpu.concatenate %54, %53 in 1 : vector<1x224xf32>, vector<1x32xf32> -> vector<1x256xf32>
    %cst_17 = arith.constant 0.000000e+00 : f32
    %56 = vector.broadcast %cst_17 : f32 to vector<1x48xf32>
    %57 = vector.extract_strided_slice %36 {offsets = [0, 48], sizes = [1, 208], strides = [1, 1]} : vector<1x256xf32> to vector<1x208xf32>
    %58 = tpu.concatenate %57, %56 in 1 : vector<1x208xf32>, vector<1x48xf32> -> vector<1x256xf32>
    %cst_18 = arith.constant 0.000000e+00 : f32
    %59 = vector.broadcast %cst_18 : f32 to vector<1x48xf32>
    %60 = vector.extract_strided_slice %40 {offsets = [0, 0], sizes = [1, 208], strides = [1, 1]} : vector<1x256xf32> to vector<1x208xf32>
    %61 = tpu.concatenate %59, %60 in 1 : vector<1x48xf32>, vector<1x208xf32> -> vector<1x256xf32>
    %cst_19 = arith.constant 0.000000e+00 : f32
    %62 = vector.broadcast %cst_19 : f32 to vector<1x32xf32>
    %63 = vector.extract_strided_slice %40 {offsets = [0, 0], sizes = [1, 224], strides = [1, 1]} : vector<1x256xf32> to vector<1x224xf32>
    %64 = tpu.concatenate %62, %63 in 1 : vector<1x32xf32>, vector<1x224xf32> -> vector<1x256xf32>
    %cst_20 = arith.constant 0.000000e+00 : f32
    %65 = vector.broadcast %cst_20 : f32 to vector<1x16xf32>
    %66 = vector.extract_strided_slice %40 {offsets = [0, 0], sizes = [1, 240], strides = [1, 1]} : vector<1x256xf32> to vector<1x240xf32>
    %67 = tpu.concatenate %65, %66 in 1 : vector<1x16xf32>, vector<1x240xf32> -> vector<1x256xf32>
    %cst_21 = arith.constant 0.000000e+00 : f32
    %68 = vector.broadcast %cst_21 : f32 to vector<1x16xf32>
    %69 = vector.extract_strided_slice %40 {offsets = [0, 16], sizes = [1, 240], strides = [1, 1]} : vector<1x256xf32> to vector<1x240xf32>
    %70 = tpu.concatenate %69, %68 in 1 : vector<1x240xf32>, vector<1x16xf32> -> vector<1x256xf32>
    %cst_22 = arith.constant 0.000000e+00 : f32
    %71 = vector.broadcast %cst_22 : f32 to vector<1x32xf32>
    %72 = vector.extract_strided_slice %40 {offsets = [0, 32], sizes = [1, 224], strides = [1, 1]} : vector<1x256xf32> to vector<1x224xf32>
    %73 = tpu.concatenate %72, %71 in 1 : vector<1x224xf32>, vector<1x32xf32> -> vector<1x256xf32>
    %cst_23 = arith.constant 0.000000e+00 : f32
    %74 = vector.broadcast %cst_23 : f32 to vector<1x48xf32>
    %75 = vector.extract_strided_slice %40 {offsets = [0, 48], sizes = [1, 208], strides = [1, 1]} : vector<1x256xf32> to vector<1x208xf32>
    %76 = tpu.concatenate %75, %74 in 1 : vector<1x208xf32>, vector<1x48xf32> -> vector<1x256xf32>
    %77 = tpu.iota {dimensions = array<i32: 1>} : vector<1x256xi32>
    %c16_i32 = arith.constant 16 : i32
    %c0_i32 = arith.constant 0 : i32
    %78 = arith.cmpi eq, %c16_i32, %c0_i32 : i32
    %c1_i32 = arith.constant 1 : i32
    %79 = arith.select %78, %c1_i32, %c16_i32 : i32
    %80 = vector.broadcast %79 : i32 to vector<1x256xi32>
    %81 = arith.remsi %77, %80 : vector<1x256xi32>
    %c0_i32_24 = arith.constant 0 : i32
    %82 = vector.broadcast %c0_i32_24 : i32 to vector<1x256xi32>
    %83 = arith.cmpi ne, %81, %82 : vector<1x256xi32>
    %c0_i32_25 = arith.constant 0 : i32
    %84 = vector.broadcast %c0_i32_25 : i32 to vector<1x256xi32>
    %85 = arith.cmpi slt, %81, %84 : vector<1x256xi32>
    %c0_i32_26 = arith.constant 0 : i32
    %86 = arith.cmpi slt, %79, %c0_i32_26 : i32
    %87 = vector.broadcast %86 : i1 to vector<1x256xi1>
    %88 = vector.broadcast %87 : vector<1x256xi1> to vector<1x256xi1>
    %89 = arith.xori %85, %88 : vector<1x256xi1>
    %90 = arith.andi %89, %83 : vector<1x256xi1>
    %91 = vector.broadcast %79 : i32 to vector<1x256xi32>
    %92 = arith.addi %81, %91 : vector<1x256xi32>
    %93 = arith.select %90, %92, %81 : vector<1x256xi1>, vector<1x256xi32>
    %cst_27 = arith.constant 0.000000e+00 : f32
    %94 = vector.broadcast %cst_27 : f32 to vector<1x256xf32>
    %cst_28 = arith.constant 0.000000e+00 : f32
    %95 = vector.broadcast %cst_28 : f32 to vector<1x256xf32>
    %c0_29 = arith.constant 0 : index
    %96 = memref.load %arg2[%c0_29] : memref<98xf32, #tpu.memory_space<smem>>
    %97 = vector.broadcast %96 : f32 to vector<1x256xf32>
    %98 = arith.mulf %97, %43 : vector<1x256xf32>
    %c49 = arith.constant 49 : index
    %99 = memref.load %arg2[%c49] : memref<98xf32, #tpu.memory_space<smem>>
    %100 = vector.broadcast %99 : f32 to vector<1x256xf32>
    %101 = arith.mulf %100, %61 : vector<1x256xf32>
    %102 = arith.addf %98, %101 : vector<1x256xf32>
    %103 = arith.addf %94, %102 : vector<1x256xf32>
    %c7 = arith.constant 7 : index
    %104 = memref.load %arg2[%c7] : memref<98xf32, #tpu.memory_space<smem>>
    %105 = vector.broadcast %104 : f32 to vector<1x256xf32>
    %106 = arith.mulf %105, %46 : vector<1x256xf32>
    %c56 = arith.constant 56 : index
    %107 = memref.load %arg2[%c56] : memref<98xf32, #tpu.memory_space<smem>>
    %108 = vector.broadcast %107 : f32 to vector<1x256xf32>
    %109 = arith.mulf %108, %64 : vector<1x256xf32>
    %110 = arith.addf %106, %109 : vector<1x256xf32>
    %111 = arith.addf %95, %110 : vector<1x256xf32>
    %c14 = arith.constant 14 : index
    %112 = memref.load %arg2[%c14] : memref<98xf32, #tpu.memory_space<smem>>
    %113 = vector.broadcast %112 : f32 to vector<1x256xf32>
    %114 = arith.mulf %113, %49 : vector<1x256xf32>
    %c63 = arith.constant 63 : index
    %115 = memref.load %arg2[%c63] : memref<98xf32, #tpu.memory_space<smem>>
    %116 = vector.broadcast %115 : f32 to vector<1x256xf32>
    %117 = arith.mulf %116, %67 : vector<1x256xf32>
    %118 = arith.addf %114, %117 : vector<1x256xf32>
    %119 = arith.addf %103, %118 : vector<1x256xf32>
    %c21 = arith.constant 21 : index
    %120 = memref.load %arg2[%c21] : memref<98xf32, #tpu.memory_space<smem>>
    %121 = vector.broadcast %120 : f32 to vector<1x256xf32>
    %122 = arith.mulf %121, %36 : vector<1x256xf32>
    %c70 = arith.constant 70 : index
    %123 = memref.load %arg2[%c70] : memref<98xf32, #tpu.memory_space<smem>>
    %124 = vector.broadcast %123 : f32 to vector<1x256xf32>
    %125 = arith.mulf %124, %40 : vector<1x256xf32>
    %126 = arith.addf %122, %125 : vector<1x256xf32>
    %127 = arith.addf %111, %126 : vector<1x256xf32>
    %c28 = arith.constant 28 : index
    %128 = memref.load %arg2[%c28] : memref<98xf32, #tpu.memory_space<smem>>
    %129 = vector.broadcast %128 : f32 to vector<1x256xf32>
    %130 = arith.mulf %129, %52 : vector<1x256xf32>
    %c77 = arith.constant 77 : index
    %131 = memref.load %arg2[%c77] : memref<98xf32, #tpu.memory_space<smem>>
    %132 = vector.broadcast %131 : f32 to vector<1x256xf32>
    %133 = arith.mulf %132, %70 : vector<1x256xf32>
    %134 = arith.addf %130, %133 : vector<1x256xf32>
    %135 = arith.addf %119, %134 : vector<1x256xf32>
    %c35 = arith.constant 35 : index
    %136 = memref.load %arg2[%c35] : memref<98xf32, #tpu.memory_space<smem>>
    %137 = vector.broadcast %136 : f32 to vector<1x256xf32>
    %138 = arith.mulf %137, %55 : vector<1x256xf32>
    %c84 = arith.constant 84 : index
    %139 = memref.load %arg2[%c84] : memref<98xf32, #tpu.memory_space<smem>>
    %140 = vector.broadcast %139 : f32 to vector<1x256xf32>
    %141 = arith.mulf %140, %73 : vector<1x256xf32>
    %142 = arith.addf %138, %141 : vector<1x256xf32>
    %143 = arith.addf %127, %142 : vector<1x256xf32>
    %c42 = arith.constant 42 : index
    %144 = memref.load %arg2[%c42] : memref<98xf32, #tpu.memory_space<smem>>
    %145 = vector.broadcast %144 : f32 to vector<1x256xf32>
    %146 = arith.mulf %145, %58 : vector<1x256xf32>
    %c91 = arith.constant 91 : index
    %147 = memref.load %arg2[%c91] : memref<98xf32, #tpu.memory_space<smem>>
    %148 = vector.broadcast %147 : f32 to vector<1x256xf32>
    %149 = arith.mulf %148, %76 : vector<1x256xf32>
    %150 = arith.addf %146, %149 : vector<1x256xf32>
    %151 = arith.addf %135, %150 : vector<1x256xf32>
    %152 = arith.addf %151, %143 : vector<1x256xf32>
    %cst_30 = arith.constant 0.000000e+00 : f32
    %153 = vector.broadcast %cst_30 : f32 to vector<1x3xf32>
    %154 = vector.extract_strided_slice %152 {offsets = [0, 0], sizes = [1, 253], strides = [1, 1]} : vector<1x256xf32> to vector<1x253xf32>
    %155 = tpu.concatenate %153, %154 in 1 : vector<1x3xf32>, vector<1x253xf32> -> vector<1x256xf32>
    %c-3_i32 = arith.constant -3 : i32
    %156 = vector.broadcast %c-3_i32 : i32 to vector<1x256xi32>
    %157 = arith.addi %93, %156 : vector<1x256xi32>
    %c0_i32_31 = arith.constant 0 : i32
    %158 = vector.broadcast %c0_i32_31 : i32 to vector<1x256xi32>
    %159 = arith.cmpi sge, %157, %158 : vector<1x256xi32>
    %c-3_i32_32 = arith.constant -3 : i32
    %160 = vector.broadcast %c-3_i32_32 : i32 to vector<1x256xi32>
    %161 = arith.addi %93, %160 : vector<1x256xi32>
    %c16_i32_33 = arith.constant 16 : i32
    %162 = vector.broadcast %c16_i32_33 : i32 to vector<1x256xi32>
    %163 = arith.cmpi slt, %161, %162 : vector<1x256xi32>
    %164 = arith.andi %159, %163 : vector<1x256xi1>
    %cst_34 = arith.constant 0.000000e+00 : f32
    %165 = vector.broadcast %cst_34 : f32 to vector<1x256xf32>
    %166 = arith.select %164, %155, %165 : vector<1x256xi1>, vector<1x256xf32>
    %cst_35 = arith.constant 0.000000e+00 : f32
    %167 = vector.broadcast %cst_35 : f32 to vector<1x256xf32>
    %cst_36 = arith.constant 0.000000e+00 : f32
    %168 = vector.broadcast %cst_36 : f32 to vector<1x256xf32>
    %c1_37 = arith.constant 1 : index
    %169 = memref.load %arg2[%c1_37] : memref<98xf32, #tpu.memory_space<smem>>
    %170 = vector.broadcast %169 : f32 to vector<1x256xf32>
    %171 = arith.mulf %170, %43 : vector<1x256xf32>
    %c50 = arith.constant 50 : index
    %172 = memref.load %arg2[%c50] : memref<98xf32, #tpu.memory_space<smem>>
    %173 = vector.broadcast %172 : f32 to vector<1x256xf32>
    %174 = arith.mulf %173, %61 : vector<1x256xf32>
    %175 = arith.addf %171, %174 : vector<1x256xf32>
    %176 = arith.addf %167, %175 : vector<1x256xf32>
    %c8 = arith.constant 8 : index
    %177 = memref.load %arg2[%c8] : memref<98xf32, #tpu.memory_space<smem>>
    %178 = vector.broadcast %177 : f32 to vector<1x256xf32>
    %179 = arith.mulf %178, %46 : vector<1x256xf32>
    %c57 = arith.constant 57 : index
    %180 = memref.load %arg2[%c57] : memref<98xf32, #tpu.memory_space<smem>>
    %181 = vector.broadcast %180 : f32 to vector<1x256xf32>
    %182 = arith.mulf %181, %64 : vector<1x256xf32>
    %183 = arith.addf %179, %182 : vector<1x256xf32>
    %184 = arith.addf %168, %183 : vector<1x256xf32>
    %c15 = arith.constant 15 : index
    %185 = memref.load %arg2[%c15] : memref<98xf32, #tpu.memory_space<smem>>
    %186 = vector.broadcast %185 : f32 to vector<1x256xf32>
    %187 = arith.mulf %186, %49 : vector<1x256xf32>
    %c64 = arith.constant 64 : index
    %188 = memref.load %arg2[%c64] : memref<98xf32, #tpu.memory_space<smem>>
    %189 = vector.broadcast %188 : f32 to vector<1x256xf32>
    %190 = arith.mulf %189, %67 : vector<1x256xf32>
    %191 = arith.addf %187, %190 : vector<1x256xf32>
    %192 = arith.addf %176, %191 : vector<1x256xf32>
    %c22 = arith.constant 22 : index
    %193 = memref.load %arg2[%c22] : memref<98xf32, #tpu.memory_space<smem>>
    %194 = vector.broadcast %193 : f32 to vector<1x256xf32>
    %195 = arith.mulf %194, %36 : vector<1x256xf32>
    %c71 = arith.constant 71 : index
    %196 = memref.load %arg2[%c71] : memref<98xf32, #tpu.memory_space<smem>>
    %197 = vector.broadcast %196 : f32 to vector<1x256xf32>
    %198 = arith.mulf %197, %40 : vector<1x256xf32>
    %199 = arith.addf %195, %198 : vector<1x256xf32>
    %200 = arith.addf %184, %199 : vector<1x256xf32>
    %c29 = arith.constant 29 : index
    %201 = memref.load %arg2[%c29] : memref<98xf32, #tpu.memory_space<smem>>
    %202 = vector.broadcast %201 : f32 to vector<1x256xf32>
    %203 = arith.mulf %202, %52 : vector<1x256xf32>
    %c78 = arith.constant 78 : index
    %204 = memref.load %arg2[%c78] : memref<98xf32, #tpu.memory_space<smem>>
    %205 = vector.broadcast %204 : f32 to vector<1x256xf32>
    %206 = arith.mulf %205, %70 : vector<1x256xf32>
    %207 = arith.addf %203, %206 : vector<1x256xf32>
    %208 = arith.addf %192, %207 : vector<1x256xf32>
    %c36 = arith.constant 36 : index
    %209 = memref.load %arg2[%c36] : memref<98xf32, #tpu.memory_space<smem>>
    %210 = vector.broadcast %209 : f32 to vector<1x256xf32>
    %211 = arith.mulf %210, %55 : vector<1x256xf32>
    %c85 = arith.constant 85 : index
    %212 = memref.load %arg2[%c85] : memref<98xf32, #tpu.memory_space<smem>>
    %213 = vector.broadcast %212 : f32 to vector<1x256xf32>
    %214 = arith.mulf %213, %73 : vector<1x256xf32>
    %215 = arith.addf %211, %214 : vector<1x256xf32>
    %216 = arith.addf %200, %215 : vector<1x256xf32>
    %c43 = arith.constant 43 : index
    %217 = memref.load %arg2[%c43] : memref<98xf32, #tpu.memory_space<smem>>
    %218 = vector.broadcast %217 : f32 to vector<1x256xf32>
    %219 = arith.mulf %218, %58 : vector<1x256xf32>
    %c92 = arith.constant 92 : index
    %220 = memref.load %arg2[%c92] : memref<98xf32, #tpu.memory_space<smem>>
    %221 = vector.broadcast %220 : f32 to vector<1x256xf32>
    %222 = arith.mulf %221, %76 : vector<1x256xf32>
    %223 = arith.addf %219, %222 : vector<1x256xf32>
    %224 = arith.addf %208, %223 : vector<1x256xf32>
    %225 = arith.addf %224, %216 : vector<1x256xf32>
    %cst_38 = arith.constant 0.000000e+00 : f32
    %226 = vector.broadcast %cst_38 : f32 to vector<1x2xf32>
    %227 = vector.extract_strided_slice %225 {offsets = [0, 0], sizes = [1, 254], strides = [1, 1]} : vector<1x256xf32> to vector<1x254xf32>
    %228 = tpu.concatenate %226, %227 in 1 : vector<1x2xf32>, vector<1x254xf32> -> vector<1x256xf32>
    %c-2_i32 = arith.constant -2 : i32
    %229 = vector.broadcast %c-2_i32 : i32 to vector<1x256xi32>
    %230 = arith.addi %93, %229 : vector<1x256xi32>
    %c0_i32_39 = arith.constant 0 : i32
    %231 = vector.broadcast %c0_i32_39 : i32 to vector<1x256xi32>
    %232 = arith.cmpi sge, %230, %231 : vector<1x256xi32>
    %c-2_i32_40 = arith.constant -2 : i32
    %233 = vector.broadcast %c-2_i32_40 : i32 to vector<1x256xi32>
    %234 = arith.addi %93, %233 : vector<1x256xi32>
    %c16_i32_41 = arith.constant 16 : i32
    %235 = vector.broadcast %c16_i32_41 : i32 to vector<1x256xi32>
    %236 = arith.cmpi slt, %234, %235 : vector<1x256xi32>
    %237 = arith.andi %232, %236 : vector<1x256xi1>
    %cst_42 = arith.constant 0.000000e+00 : f32
    %238 = vector.broadcast %cst_42 : f32 to vector<1x256xf32>
    %239 = arith.select %237, %228, %238 : vector<1x256xi1>, vector<1x256xf32>
    %cst_43 = arith.constant 0.000000e+00 : f32
    %240 = vector.broadcast %cst_43 : f32 to vector<1x256xf32>
    %cst_44 = arith.constant 0.000000e+00 : f32
    %241 = vector.broadcast %cst_44 : f32 to vector<1x256xf32>
    %c2_45 = arith.constant 2 : index
    %242 = memref.load %arg2[%c2_45] : memref<98xf32, #tpu.memory_space<smem>>
    %243 = vector.broadcast %242 : f32 to vector<1x256xf32>
    %244 = arith.mulf %243, %43 : vector<1x256xf32>
    %c51 = arith.constant 51 : index
    %245 = memref.load %arg2[%c51] : memref<98xf32, #tpu.memory_space<smem>>
    %246 = vector.broadcast %245 : f32 to vector<1x256xf32>
    %247 = arith.mulf %246, %61 : vector<1x256xf32>
    %248 = arith.addf %244, %247 : vector<1x256xf32>
    %249 = arith.addf %240, %248 : vector<1x256xf32>
    %c9 = arith.constant 9 : index
    %250 = memref.load %arg2[%c9] : memref<98xf32, #tpu.memory_space<smem>>
    %251 = vector.broadcast %250 : f32 to vector<1x256xf32>
    %252 = arith.mulf %251, %46 : vector<1x256xf32>
    %c58 = arith.constant 58 : index
    %253 = memref.load %arg2[%c58] : memref<98xf32, #tpu.memory_space<smem>>
    %254 = vector.broadcast %253 : f32 to vector<1x256xf32>
    %255 = arith.mulf %254, %64 : vector<1x256xf32>
    %256 = arith.addf %252, %255 : vector<1x256xf32>
    %257 = arith.addf %241, %256 : vector<1x256xf32>
    %c16 = arith.constant 16 : index
    %258 = memref.load %arg2[%c16] : memref<98xf32, #tpu.memory_space<smem>>
    %259 = vector.broadcast %258 : f32 to vector<1x256xf32>
    %260 = arith.mulf %259, %49 : vector<1x256xf32>
    %c65 = arith.constant 65 : index
    %261 = memref.load %arg2[%c65] : memref<98xf32, #tpu.memory_space<smem>>
    %262 = vector.broadcast %261 : f32 to vector<1x256xf32>
    %263 = arith.mulf %262, %67 : vector<1x256xf32>
    %264 = arith.addf %260, %263 : vector<1x256xf32>
    %265 = arith.addf %249, %264 : vector<1x256xf32>
    %c23 = arith.constant 23 : index
    %266 = memref.load %arg2[%c23] : memref<98xf32, #tpu.memory_space<smem>>
    %267 = vector.broadcast %266 : f32 to vector<1x256xf32>
    %268 = arith.mulf %267, %36 : vector<1x256xf32>
    %c72 = arith.constant 72 : index
    %269 = memref.load %arg2[%c72] : memref<98xf32, #tpu.memory_space<smem>>
    %270 = vector.broadcast %269 : f32 to vector<1x256xf32>
    %271 = arith.mulf %270, %40 : vector<1x256xf32>
    %272 = arith.addf %268, %271 : vector<1x256xf32>
    %273 = arith.addf %257, %272 : vector<1x256xf32>
    %c30 = arith.constant 30 : index
    %274 = memref.load %arg2[%c30] : memref<98xf32, #tpu.memory_space<smem>>
    %275 = vector.broadcast %274 : f32 to vector<1x256xf32>
    %276 = arith.mulf %275, %52 : vector<1x256xf32>
    %c79 = arith.constant 79 : index
    %277 = memref.load %arg2[%c79] : memref<98xf32, #tpu.memory_space<smem>>
    %278 = vector.broadcast %277 : f32 to vector<1x256xf32>
    %279 = arith.mulf %278, %70 : vector<1x256xf32>
    %280 = arith.addf %276, %279 : vector<1x256xf32>
    %281 = arith.addf %265, %280 : vector<1x256xf32>
    %c37 = arith.constant 37 : index
    %282 = memref.load %arg2[%c37] : memref<98xf32, #tpu.memory_space<smem>>
    %283 = vector.broadcast %282 : f32 to vector<1x256xf32>
    %284 = arith.mulf %283, %55 : vector<1x256xf32>
    %c86 = arith.constant 86 : index
    %285 = memref.load %arg2[%c86] : memref<98xf32, #tpu.memory_space<smem>>
    %286 = vector.broadcast %285 : f32 to vector<1x256xf32>
    %287 = arith.mulf %286, %73 : vector<1x256xf32>
    %288 = arith.addf %284, %287 : vector<1x256xf32>
    %289 = arith.addf %273, %288 : vector<1x256xf32>
    %c44 = arith.constant 44 : index
    %290 = memref.load %arg2[%c44] : memref<98xf32, #tpu.memory_space<smem>>
    %291 = vector.broadcast %290 : f32 to vector<1x256xf32>
    %292 = arith.mulf %291, %58 : vector<1x256xf32>
    %c93 = arith.constant 93 : index
    %293 = memref.load %arg2[%c93] : memref<98xf32, #tpu.memory_space<smem>>
    %294 = vector.broadcast %293 : f32 to vector<1x256xf32>
    %295 = arith.mulf %294, %76 : vector<1x256xf32>
    %296 = arith.addf %292, %295 : vector<1x256xf32>
    %297 = arith.addf %281, %296 : vector<1x256xf32>
    %298 = arith.addf %297, %289 : vector<1x256xf32>
    %cst_46 = arith.constant 0.000000e+00 : f32
    %299 = vector.broadcast %cst_46 : f32 to vector<1x1xf32>
    %300 = vector.extract_strided_slice %298 {offsets = [0, 0], sizes = [1, 255], strides = [1, 1]} : vector<1x256xf32> to vector<1x255xf32>
    %301 = tpu.concatenate %299, %300 in 1 : vector<1x1xf32>, vector<1x255xf32> -> vector<1x256xf32>
    %c-1_i32 = arith.constant -1 : i32
    %302 = vector.broadcast %c-1_i32 : i32 to vector<1x256xi32>
    %303 = arith.addi %93, %302 : vector<1x256xi32>
    %c0_i32_47 = arith.constant 0 : i32
    %304 = vector.broadcast %c0_i32_47 : i32 to vector<1x256xi32>
    %305 = arith.cmpi sge, %303, %304 : vector<1x256xi32>
    %c-1_i32_48 = arith.constant -1 : i32
    %306 = vector.broadcast %c-1_i32_48 : i32 to vector<1x256xi32>
    %307 = arith.addi %93, %306 : vector<1x256xi32>
    %c16_i32_49 = arith.constant 16 : i32
    %308 = vector.broadcast %c16_i32_49 : i32 to vector<1x256xi32>
    %309 = arith.cmpi slt, %307, %308 : vector<1x256xi32>
    %310 = arith.andi %305, %309 : vector<1x256xi1>
    %cst_50 = arith.constant 0.000000e+00 : f32
    %311 = vector.broadcast %cst_50 : f32 to vector<1x256xf32>
    %312 = arith.select %310, %301, %311 : vector<1x256xi1>, vector<1x256xf32>
    %cst_51 = arith.constant 0.000000e+00 : f32
    %313 = vector.broadcast %cst_51 : f32 to vector<1x256xf32>
    %cst_52 = arith.constant 0.000000e+00 : f32
    %314 = vector.broadcast %cst_52 : f32 to vector<1x256xf32>
    %c3 = arith.constant 3 : index
    %315 = memref.load %arg2[%c3] : memref<98xf32, #tpu.memory_space<smem>>
    %316 = vector.broadcast %315 : f32 to vector<1x256xf32>
    %317 = arith.mulf %316, %43 : vector<1x256xf32>
    %c52 = arith.constant 52 : index
    %318 = memref.load %arg2[%c52] : memref<98xf32, #tpu.memory_space<smem>>
    %319 = vector.broadcast %318 : f32 to vector<1x256xf32>
    %320 = arith.mulf %319, %61 : vector<1x256xf32>
    %321 = arith.addf %317, %320 : vector<1x256xf32>
    %322 = arith.addf %313, %321 : vector<1x256xf32>
    %c10 = arith.constant 10 : index
    %323 = memref.load %arg2[%c10] : memref<98xf32, #tpu.memory_space<smem>>
    %324 = vector.broadcast %323 : f32 to vector<1x256xf32>
    %325 = arith.mulf %324, %46 : vector<1x256xf32>
    %c59 = arith.constant 59 : index
    %326 = memref.load %arg2[%c59] : memref<98xf32, #tpu.memory_space<smem>>
    %327 = vector.broadcast %326 : f32 to vector<1x256xf32>
    %328 = arith.mulf %327, %64 : vector<1x256xf32>
    %329 = arith.addf %325, %328 : vector<1x256xf32>
    %330 = arith.addf %314, %329 : vector<1x256xf32>
    %c17 = arith.constant 17 : index
    %331 = memref.load %arg2[%c17] : memref<98xf32, #tpu.memory_space<smem>>
    %332 = vector.broadcast %331 : f32 to vector<1x256xf32>
    %333 = arith.mulf %332, %49 : vector<1x256xf32>
    %c66 = arith.constant 66 : index
    %334 = memref.load %arg2[%c66] : memref<98xf32, #tpu.memory_space<smem>>
    %335 = vector.broadcast %334 : f32 to vector<1x256xf32>
    %336 = arith.mulf %335, %67 : vector<1x256xf32>
    %337 = arith.addf %333, %336 : vector<1x256xf32>
    %338 = arith.addf %322, %337 : vector<1x256xf32>
    %c24 = arith.constant 24 : index
    %339 = memref.load %arg2[%c24] : memref<98xf32, #tpu.memory_space<smem>>
    %340 = vector.broadcast %339 : f32 to vector<1x256xf32>
    %341 = arith.mulf %340, %36 : vector<1x256xf32>
    %c73 = arith.constant 73 : index
    %342 = memref.load %arg2[%c73] : memref<98xf32, #tpu.memory_space<smem>>
    %343 = vector.broadcast %342 : f32 to vector<1x256xf32>
    %344 = arith.mulf %343, %40 : vector<1x256xf32>
    %345 = arith.addf %341, %344 : vector<1x256xf32>
    %346 = arith.addf %330, %345 : vector<1x256xf32>
    %c31 = arith.constant 31 : index
    %347 = memref.load %arg2[%c31] : memref<98xf32, #tpu.memory_space<smem>>
    %348 = vector.broadcast %347 : f32 to vector<1x256xf32>
    %349 = arith.mulf %348, %52 : vector<1x256xf32>
    %c80 = arith.constant 80 : index
    %350 = memref.load %arg2[%c80] : memref<98xf32, #tpu.memory_space<smem>>
    %351 = vector.broadcast %350 : f32 to vector<1x256xf32>
    %352 = arith.mulf %351, %70 : vector<1x256xf32>
    %353 = arith.addf %349, %352 : vector<1x256xf32>
    %354 = arith.addf %338, %353 : vector<1x256xf32>
    %c38 = arith.constant 38 : index
    %355 = memref.load %arg2[%c38] : memref<98xf32, #tpu.memory_space<smem>>
    %356 = vector.broadcast %355 : f32 to vector<1x256xf32>
    %357 = arith.mulf %356, %55 : vector<1x256xf32>
    %c87 = arith.constant 87 : index
    %358 = memref.load %arg2[%c87] : memref<98xf32, #tpu.memory_space<smem>>
    %359 = vector.broadcast %358 : f32 to vector<1x256xf32>
    %360 = arith.mulf %359, %73 : vector<1x256xf32>
    %361 = arith.addf %357, %360 : vector<1x256xf32>
    %362 = arith.addf %346, %361 : vector<1x256xf32>
    %c45 = arith.constant 45 : index
    %363 = memref.load %arg2[%c45] : memref<98xf32, #tpu.memory_space<smem>>
    %364 = vector.broadcast %363 : f32 to vector<1x256xf32>
    %365 = arith.mulf %364, %58 : vector<1x256xf32>
    %c94 = arith.constant 94 : index
    %366 = memref.load %arg2[%c94] : memref<98xf32, #tpu.memory_space<smem>>
    %367 = vector.broadcast %366 : f32 to vector<1x256xf32>
    %368 = arith.mulf %367, %76 : vector<1x256xf32>
    %369 = arith.addf %365, %368 : vector<1x256xf32>
    %370 = arith.addf %354, %369 : vector<1x256xf32>
    %371 = arith.addf %370, %362 : vector<1x256xf32>
    %cst_53 = arith.constant 0.000000e+00 : f32
    %372 = vector.broadcast %cst_53 : f32 to vector<1x256xf32>
    %cst_54 = arith.constant 0.000000e+00 : f32
    %373 = vector.broadcast %cst_54 : f32 to vector<1x256xf32>
    %c4 = arith.constant 4 : index
    %374 = memref.load %arg2[%c4] : memref<98xf32, #tpu.memory_space<smem>>
    %375 = vector.broadcast %374 : f32 to vector<1x256xf32>
    %376 = arith.mulf %375, %43 : vector<1x256xf32>
    %c53 = arith.constant 53 : index
    %377 = memref.load %arg2[%c53] : memref<98xf32, #tpu.memory_space<smem>>
    %378 = vector.broadcast %377 : f32 to vector<1x256xf32>
    %379 = arith.mulf %378, %61 : vector<1x256xf32>
    %380 = arith.addf %376, %379 : vector<1x256xf32>
    %381 = arith.addf %372, %380 : vector<1x256xf32>
    %c11 = arith.constant 11 : index
    %382 = memref.load %arg2[%c11] : memref<98xf32, #tpu.memory_space<smem>>
    %383 = vector.broadcast %382 : f32 to vector<1x256xf32>
    %384 = arith.mulf %383, %46 : vector<1x256xf32>
    %c60 = arith.constant 60 : index
    %385 = memref.load %arg2[%c60] : memref<98xf32, #tpu.memory_space<smem>>
    %386 = vector.broadcast %385 : f32 to vector<1x256xf32>
    %387 = arith.mulf %386, %64 : vector<1x256xf32>
    %388 = arith.addf %384, %387 : vector<1x256xf32>
    %389 = arith.addf %373, %388 : vector<1x256xf32>
    %c18 = arith.constant 18 : index
    %390 = memref.load %arg2[%c18] : memref<98xf32, #tpu.memory_space<smem>>
    %391 = vector.broadcast %390 : f32 to vector<1x256xf32>
    %392 = arith.mulf %391, %49 : vector<1x256xf32>
    %c67 = arith.constant 67 : index
    %393 = memref.load %arg2[%c67] : memref<98xf32, #tpu.memory_space<smem>>
    %394 = vector.broadcast %393 : f32 to vector<1x256xf32>
    %395 = arith.mulf %394, %67 : vector<1x256xf32>
    %396 = arith.addf %392, %395 : vector<1x256xf32>
    %397 = arith.addf %381, %396 : vector<1x256xf32>
    %c25 = arith.constant 25 : index
    %398 = memref.load %arg2[%c25] : memref<98xf32, #tpu.memory_space<smem>>
    %399 = vector.broadcast %398 : f32 to vector<1x256xf32>
    %400 = arith.mulf %399, %36 : vector<1x256xf32>
    %c74 = arith.constant 74 : index
    %401 = memref.load %arg2[%c74] : memref<98xf32, #tpu.memory_space<smem>>
    %402 = vector.broadcast %401 : f32 to vector<1x256xf32>
    %403 = arith.mulf %402, %40 : vector<1x256xf32>
    %404 = arith.addf %400, %403 : vector<1x256xf32>
    %405 = arith.addf %389, %404 : vector<1x256xf32>
    %c32 = arith.constant 32 : index
    %406 = memref.load %arg2[%c32] : memref<98xf32, #tpu.memory_space<smem>>
    %407 = vector.broadcast %406 : f32 to vector<1x256xf32>
    %408 = arith.mulf %407, %52 : vector<1x256xf32>
    %c81 = arith.constant 81 : index
    %409 = memref.load %arg2[%c81] : memref<98xf32, #tpu.memory_space<smem>>
    %410 = vector.broadcast %409 : f32 to vector<1x256xf32>
    %411 = arith.mulf %410, %70 : vector<1x256xf32>
    %412 = arith.addf %408, %411 : vector<1x256xf32>
    %413 = arith.addf %397, %412 : vector<1x256xf32>
    %c39 = arith.constant 39 : index
    %414 = memref.load %arg2[%c39] : memref<98xf32, #tpu.memory_space<smem>>
    %415 = vector.broadcast %414 : f32 to vector<1x256xf32>
    %416 = arith.mulf %415, %55 : vector<1x256xf32>
    %c88 = arith.constant 88 : index
    %417 = memref.load %arg2[%c88] : memref<98xf32, #tpu.memory_space<smem>>
    %418 = vector.broadcast %417 : f32 to vector<1x256xf32>
    %419 = arith.mulf %418, %73 : vector<1x256xf32>
    %420 = arith.addf %416, %419 : vector<1x256xf32>
    %421 = arith.addf %405, %420 : vector<1x256xf32>
    %c46 = arith.constant 46 : index
    %422 = memref.load %arg2[%c46] : memref<98xf32, #tpu.memory_space<smem>>
    %423 = vector.broadcast %422 : f32 to vector<1x256xf32>
    %424 = arith.mulf %423, %58 : vector<1x256xf32>
    %c95 = arith.constant 95 : index
    %425 = memref.load %arg2[%c95] : memref<98xf32, #tpu.memory_space<smem>>
    %426 = vector.broadcast %425 : f32 to vector<1x256xf32>
    %427 = arith.mulf %426, %76 : vector<1x256xf32>
    %428 = arith.addf %424, %427 : vector<1x256xf32>
    %429 = arith.addf %413, %428 : vector<1x256xf32>
    %430 = arith.addf %429, %421 : vector<1x256xf32>
    %cst_55 = arith.constant 0.000000e+00 : f32
    %431 = vector.broadcast %cst_55 : f32 to vector<1x1xf32>
    %432 = vector.extract_strided_slice %430 {offsets = [0, 1], sizes = [1, 255], strides = [1, 1]} : vector<1x256xf32> to vector<1x255xf32>
    %433 = tpu.concatenate %432, %431 in 1 : vector<1x255xf32>, vector<1x1xf32> -> vector<1x256xf32>
    %c1_i32_56 = arith.constant 1 : i32
    %434 = vector.broadcast %c1_i32_56 : i32 to vector<1x256xi32>
    %435 = arith.addi %93, %434 : vector<1x256xi32>
    %c0_i32_57 = arith.constant 0 : i32
    %436 = vector.broadcast %c0_i32_57 : i32 to vector<1x256xi32>
    %437 = arith.cmpi sge, %435, %436 : vector<1x256xi32>
    %c1_i32_58 = arith.constant 1 : i32
    %438 = vector.broadcast %c1_i32_58 : i32 to vector<1x256xi32>
    %439 = arith.addi %93, %438 : vector<1x256xi32>
    %c16_i32_59 = arith.constant 16 : i32
    %440 = vector.broadcast %c16_i32_59 : i32 to vector<1x256xi32>
    %441 = arith.cmpi slt, %439, %440 : vector<1x256xi32>
    %442 = arith.andi %437, %441 : vector<1x256xi1>
    %cst_60 = arith.constant 0.000000e+00 : f32
    %443 = vector.broadcast %cst_60 : f32 to vector<1x256xf32>
    %444 = arith.select %442, %433, %443 : vector<1x256xi1>, vector<1x256xf32>
    %cst_61 = arith.constant 0.000000e+00 : f32
    %445 = vector.broadcast %cst_61 : f32 to vector<1x256xf32>
    %cst_62 = arith.constant 0.000000e+00 : f32
    %446 = vector.broadcast %cst_62 : f32 to vector<1x256xf32>
    %c5 = arith.constant 5 : index
    %447 = memref.load %arg2[%c5] : memref<98xf32, #tpu.memory_space<smem>>
    %448 = vector.broadcast %447 : f32 to vector<1x256xf32>
    %449 = arith.mulf %448, %43 : vector<1x256xf32>
    %c54 = arith.constant 54 : index
    %450 = memref.load %arg2[%c54] : memref<98xf32, #tpu.memory_space<smem>>
    %451 = vector.broadcast %450 : f32 to vector<1x256xf32>
    %452 = arith.mulf %451, %61 : vector<1x256xf32>
    %453 = arith.addf %449, %452 : vector<1x256xf32>
    %454 = arith.addf %445, %453 : vector<1x256xf32>
    %c12 = arith.constant 12 : index
    %455 = memref.load %arg2[%c12] : memref<98xf32, #tpu.memory_space<smem>>
    %456 = vector.broadcast %455 : f32 to vector<1x256xf32>
    %457 = arith.mulf %456, %46 : vector<1x256xf32>
    %c61 = arith.constant 61 : index
    %458 = memref.load %arg2[%c61] : memref<98xf32, #tpu.memory_space<smem>>
    %459 = vector.broadcast %458 : f32 to vector<1x256xf32>
    %460 = arith.mulf %459, %64 : vector<1x256xf32>
    %461 = arith.addf %457, %460 : vector<1x256xf32>
    %462 = arith.addf %446, %461 : vector<1x256xf32>
    %c19 = arith.constant 19 : index
    %463 = memref.load %arg2[%c19] : memref<98xf32, #tpu.memory_space<smem>>
    %464 = vector.broadcast %463 : f32 to vector<1x256xf32>
    %465 = arith.mulf %464, %49 : vector<1x256xf32>
    %c68 = arith.constant 68 : index
    %466 = memref.load %arg2[%c68] : memref<98xf32, #tpu.memory_space<smem>>
    %467 = vector.broadcast %466 : f32 to vector<1x256xf32>
    %468 = arith.mulf %467, %67 : vector<1x256xf32>
    %469 = arith.addf %465, %468 : vector<1x256xf32>
    %470 = arith.addf %454, %469 : vector<1x256xf32>
    %c26 = arith.constant 26 : index
    %471 = memref.load %arg2[%c26] : memref<98xf32, #tpu.memory_space<smem>>
    %472 = vector.broadcast %471 : f32 to vector<1x256xf32>
    %473 = arith.mulf %472, %36 : vector<1x256xf32>
    %c75 = arith.constant 75 : index
    %474 = memref.load %arg2[%c75] : memref<98xf32, #tpu.memory_space<smem>>
    %475 = vector.broadcast %474 : f32 to vector<1x256xf32>
    %476 = arith.mulf %475, %40 : vector<1x256xf32>
    %477 = arith.addf %473, %476 : vector<1x256xf32>
    %478 = arith.addf %462, %477 : vector<1x256xf32>
    %c33 = arith.constant 33 : index
    %479 = memref.load %arg2[%c33] : memref<98xf32, #tpu.memory_space<smem>>
    %480 = vector.broadcast %479 : f32 to vector<1x256xf32>
    %481 = arith.mulf %480, %52 : vector<1x256xf32>
    %c82 = arith.constant 82 : index
    %482 = memref.load %arg2[%c82] : memref<98xf32, #tpu.memory_space<smem>>
    %483 = vector.broadcast %482 : f32 to vector<1x256xf32>
    %484 = arith.mulf %483, %70 : vector<1x256xf32>
    %485 = arith.addf %481, %484 : vector<1x256xf32>
    %486 = arith.addf %470, %485 : vector<1x256xf32>
    %c40 = arith.constant 40 : index
    %487 = memref.load %arg2[%c40] : memref<98xf32, #tpu.memory_space<smem>>
    %488 = vector.broadcast %487 : f32 to vector<1x256xf32>
    %489 = arith.mulf %488, %55 : vector<1x256xf32>
    %c89 = arith.constant 89 : index
    %490 = memref.load %arg2[%c89] : memref<98xf32, #tpu.memory_space<smem>>
    %491 = vector.broadcast %490 : f32 to vector<1x256xf32>
    %492 = arith.mulf %491, %73 : vector<1x256xf32>
    %493 = arith.addf %489, %492 : vector<1x256xf32>
    %494 = arith.addf %478, %493 : vector<1x256xf32>
    %c47 = arith.constant 47 : index
    %495 = memref.load %arg2[%c47] : memref<98xf32, #tpu.memory_space<smem>>
    %496 = vector.broadcast %495 : f32 to vector<1x256xf32>
    %497 = arith.mulf %496, %58 : vector<1x256xf32>
    %c96 = arith.constant 96 : index
    %498 = memref.load %arg2[%c96] : memref<98xf32, #tpu.memory_space<smem>>
    %499 = vector.broadcast %498 : f32 to vector<1x256xf32>
    %500 = arith.mulf %499, %76 : vector<1x256xf32>
    %501 = arith.addf %497, %500 : vector<1x256xf32>
    %502 = arith.addf %486, %501 : vector<1x256xf32>
    %503 = arith.addf %502, %494 : vector<1x256xf32>
    %cst_63 = arith.constant 0.000000e+00 : f32
    %504 = vector.broadcast %cst_63 : f32 to vector<1x2xf32>
    %505 = vector.extract_strided_slice %503 {offsets = [0, 2], sizes = [1, 254], strides = [1, 1]} : vector<1x256xf32> to vector<1x254xf32>
    %506 = tpu.concatenate %505, %504 in 1 : vector<1x254xf32>, vector<1x2xf32> -> vector<1x256xf32>
    %c2_i32 = arith.constant 2 : i32
    %507 = vector.broadcast %c2_i32 : i32 to vector<1x256xi32>
    %508 = arith.addi %93, %507 : vector<1x256xi32>
    %c0_i32_64 = arith.constant 0 : i32
    %509 = vector.broadcast %c0_i32_64 : i32 to vector<1x256xi32>
    %510 = arith.cmpi sge, %508, %509 : vector<1x256xi32>
    %c2_i32_65 = arith.constant 2 : i32
    %511 = vector.broadcast %c2_i32_65 : i32 to vector<1x256xi32>
    %512 = arith.addi %93, %511 : vector<1x256xi32>
    %c16_i32_66 = arith.constant 16 : i32
    %513 = vector.broadcast %c16_i32_66 : i32 to vector<1x256xi32>
    %514 = arith.cmpi slt, %512, %513 : vector<1x256xi32>
    %515 = arith.andi %510, %514 : vector<1x256xi1>
    %cst_67 = arith.constant 0.000000e+00 : f32
    %516 = vector.broadcast %cst_67 : f32 to vector<1x256xf32>
    %517 = arith.select %515, %506, %516 : vector<1x256xi1>, vector<1x256xf32>
    %cst_68 = arith.constant 0.000000e+00 : f32
    %518 = vector.broadcast %cst_68 : f32 to vector<1x256xf32>
    %cst_69 = arith.constant 0.000000e+00 : f32
    %519 = vector.broadcast %cst_69 : f32 to vector<1x256xf32>
    %c6 = arith.constant 6 : index
    %520 = memref.load %arg2[%c6] : memref<98xf32, #tpu.memory_space<smem>>
    %521 = vector.broadcast %520 : f32 to vector<1x256xf32>
    %522 = arith.mulf %521, %43 : vector<1x256xf32>
    %c55 = arith.constant 55 : index
    %523 = memref.load %arg2[%c55] : memref<98xf32, #tpu.memory_space<smem>>
    %524 = vector.broadcast %523 : f32 to vector<1x256xf32>
    %525 = arith.mulf %524, %61 : vector<1x256xf32>
    %526 = arith.addf %522, %525 : vector<1x256xf32>
    %527 = arith.addf %518, %526 : vector<1x256xf32>
    %c13 = arith.constant 13 : index
    %528 = memref.load %arg2[%c13] : memref<98xf32, #tpu.memory_space<smem>>
    %529 = vector.broadcast %528 : f32 to vector<1x256xf32>
    %530 = arith.mulf %529, %46 : vector<1x256xf32>
    %c62 = arith.constant 62 : index
    %531 = memref.load %arg2[%c62] : memref<98xf32, #tpu.memory_space<smem>>
    %532 = vector.broadcast %531 : f32 to vector<1x256xf32>
    %533 = arith.mulf %532, %64 : vector<1x256xf32>
    %534 = arith.addf %530, %533 : vector<1x256xf32>
    %535 = arith.addf %519, %534 : vector<1x256xf32>
    %c20 = arith.constant 20 : index
    %536 = memref.load %arg2[%c20] : memref<98xf32, #tpu.memory_space<smem>>
    %537 = vector.broadcast %536 : f32 to vector<1x256xf32>
    %538 = arith.mulf %537, %49 : vector<1x256xf32>
    %c69 = arith.constant 69 : index
    %539 = memref.load %arg2[%c69] : memref<98xf32, #tpu.memory_space<smem>>
    %540 = vector.broadcast %539 : f32 to vector<1x256xf32>
    %541 = arith.mulf %540, %67 : vector<1x256xf32>
    %542 = arith.addf %538, %541 : vector<1x256xf32>
    %543 = arith.addf %527, %542 : vector<1x256xf32>
    %c27 = arith.constant 27 : index
    %544 = memref.load %arg2[%c27] : memref<98xf32, #tpu.memory_space<smem>>
    %545 = vector.broadcast %544 : f32 to vector<1x256xf32>
    %546 = arith.mulf %545, %36 : vector<1x256xf32>
    %c76 = arith.constant 76 : index
    %547 = memref.load %arg2[%c76] : memref<98xf32, #tpu.memory_space<smem>>
    %548 = vector.broadcast %547 : f32 to vector<1x256xf32>
    %549 = arith.mulf %548, %40 : vector<1x256xf32>
    %550 = arith.addf %546, %549 : vector<1x256xf32>
    %551 = arith.addf %535, %550 : vector<1x256xf32>
    %c34 = arith.constant 34 : index
    %552 = memref.load %arg2[%c34] : memref<98xf32, #tpu.memory_space<smem>>
    %553 = vector.broadcast %552 : f32 to vector<1x256xf32>
    %554 = arith.mulf %553, %52 : vector<1x256xf32>
    %c83 = arith.constant 83 : index
    %555 = memref.load %arg2[%c83] : memref<98xf32, #tpu.memory_space<smem>>
    %556 = vector.broadcast %555 : f32 to vector<1x256xf32>
    %557 = arith.mulf %556, %70 : vector<1x256xf32>
    %558 = arith.addf %554, %557 : vector<1x256xf32>
    %559 = arith.addf %543, %558 : vector<1x256xf32>
    %c41 = arith.constant 41 : index
    %560 = memref.load %arg2[%c41] : memref<98xf32, #tpu.memory_space<smem>>
    %561 = vector.broadcast %560 : f32 to vector<1x256xf32>
    %562 = arith.mulf %561, %55 : vector<1x256xf32>
    %c90 = arith.constant 90 : index
    %563 = memref.load %arg2[%c90] : memref<98xf32, #tpu.memory_space<smem>>
    %564 = vector.broadcast %563 : f32 to vector<1x256xf32>
    %565 = arith.mulf %564, %73 : vector<1x256xf32>
    %566 = arith.addf %562, %565 : vector<1x256xf32>
    %567 = arith.addf %551, %566 : vector<1x256xf32>
    %c48 = arith.constant 48 : index
    %568 = memref.load %arg2[%c48] : memref<98xf32, #tpu.memory_space<smem>>
    %569 = vector.broadcast %568 : f32 to vector<1x256xf32>
    %570 = arith.mulf %569, %58 : vector<1x256xf32>
    %c97 = arith.constant 97 : index
    %571 = memref.load %arg2[%c97] : memref<98xf32, #tpu.memory_space<smem>>
    %572 = vector.broadcast %571 : f32 to vector<1x256xf32>
    %573 = arith.mulf %572, %76 : vector<1x256xf32>
    %574 = arith.addf %570, %573 : vector<1x256xf32>
    %575 = arith.addf %559, %574 : vector<1x256xf32>
    %576 = arith.addf %575, %567 : vector<1x256xf32>
    %cst_70 = arith.constant 0.000000e+00 : f32
    %577 = vector.broadcast %cst_70 : f32 to vector<1x3xf32>
    %578 = vector.extract_strided_slice %576 {offsets = [0, 3], sizes = [1, 253], strides = [1, 1]} : vector<1x256xf32> to vector<1x253xf32>
    %579 = tpu.concatenate %578, %577 in 1 : vector<1x253xf32>, vector<1x3xf32> -> vector<1x256xf32>
    %c3_i32 = arith.constant 3 : i32
    %580 = vector.broadcast %c3_i32 : i32 to vector<1x256xi32>
    %581 = arith.addi %93, %580 : vector<1x256xi32>
    %c0_i32_71 = arith.constant 0 : i32
    %582 = vector.broadcast %c0_i32_71 : i32 to vector<1x256xi32>
    %583 = arith.cmpi sge, %581, %582 : vector<1x256xi32>
    %c3_i32_72 = arith.constant 3 : i32
    %584 = vector.broadcast %c3_i32_72 : i32 to vector<1x256xi32>
    %585 = arith.addi %93, %584 : vector<1x256xi32>
    %c16_i32_73 = arith.constant 16 : i32
    %586 = vector.broadcast %c16_i32_73 : i32 to vector<1x256xi32>
    %587 = arith.cmpi slt, %585, %586 : vector<1x256xi32>
    %588 = arith.andi %583, %587 : vector<1x256xi1>
    %cst_74 = arith.constant 0.000000e+00 : f32
    %589 = vector.broadcast %cst_74 : f32 to vector<1x256xf32>
    %590 = arith.select %588, %579, %589 : vector<1x256xi1>, vector<1x256xf32>
    %591 = arith.addf %166, %239 : vector<1x256xf32>
    %592 = arith.addf %312, %371 : vector<1x256xf32>
    %593 = arith.addf %444, %517 : vector<1x256xf32>
    %594 = arith.addf %591, %592 : vector<1x256xf32>
    %595 = arith.addf %593, %590 : vector<1x256xf32>
    %596 = arith.addf %594, %595 : vector<1x256xf32>
    %597 = arith.negf %596 : vector<1x256xf32>
    %598 = math.exp %597 : vector<1x256xf32>
    %cst_75 = arith.constant 1.000000e+00 : f32
    %599 = vector.broadcast %cst_75 : f32 to vector<1x256xf32>
    %600 = arith.addf %599, %598 : vector<1x256xf32>
    %601 = arith.divf %599, %600 : vector<1x256xf32>
    %c0_76 = arith.constant 0 : index
    %c0_77 = arith.constant 0 : index
    %c0_78 = arith.constant 0 : index
    %602 = vector.load %arg3[%c0_76, %c0_77, %c0_78] : memref<1x16x256xf32, #tpu.memory_space<vmem>>, vector<1x16x256xf32>
    %603 = vector.shape_cast %602 : vector<1x16x256xf32> to vector<16x256xf32>
    %604 = vector.broadcast %32 : vector<16x1xf32> to vector<16x256xf32>
    %605 = arith.mulf %603, %604 : vector<16x256xf32>
    %606 = vector.broadcast %601 : vector<1x256xf32> to vector<16x256xf32>
    %607 = arith.mulf %605, %606 : vector<16x256xf32>
    %c0_79 = arith.constant 0 : index
    %c0_80 = arith.constant 0 : index
    %c0_81 = arith.constant 0 : index
    %608 = vector.load %arg4[%c0_79, %c0_80, %c0_81] : memref<1x16x256xf32, #tpu.memory_space<vmem>>, vector<1x16x256xf32>
    %609 = vector.shape_cast %608 : vector<1x16x256xf32> to vector<16x256xf32>
    %610 = vector.shape_cast %607 : vector<16x256xf32> to vector<1x16x256xf32>
    tpu.vector_store %arg4[%c0_79, %c0_80, %c0_81], %610 {strides = array<i32>} : memref<1x16x256xf32, #tpu.memory_space<vmem>>, vector<1x16x256xf32>,
    return
  }
  func.func @transform_0(%arg0: i32) -> i32 {
    %c0_i32 = arith.constant 0 : i32
    %c0_i32_0 = arith.constant 0 : i32
    return %c0_i32 : i32
  }
  func.func @transform_1(%arg0: i32) -> i32 {
    %c0_i32 = arith.constant 0 : i32
    %c0_i32_0 = arith.constant 0 : i32
    return %c0_i32 : i32
  }
  func.func @transform_2(%arg0: i32) -> (i32, i32, i32) {
    %c0_i32 = arith.constant 0 : i32
    %c0_i32_0 = arith.constant 0 : i32
    %c0_i32_1 = arith.constant 0 : i32
    return %arg0, %c0_i32, %c0_i32_0 : i32, i32, i32
  }
  func.func @transform_3(%arg0: i32) -> (i32, i32, i32) {
    %c0_i32 = arith.constant 0 : i32
    %c0_i32_0 = arith.constant 0 : i32
    %c0_i32_1 = arith.constant 0 : i32
    return %arg0, %c0_i32, %c0_i32_0 : i32, i32, i32
  }
}

</mosaic_0001>

<llo_original>
// kernel: cbam_forward.1
$region0: #{cbam_forward.1}
  #allocation0 [shape = 'u32[]', space=smem, size = 0x4, offset = 0x4, fixed_abs, tag = 'smem constant byte address 0x4 - core index']
  #allocation1 [shape = 'u32[144,128]{1,0:T(1,128)}', space=vmem, size = 0x12000, scoped, tag = 'internal scratch']
  %s0 = inlined_call_operand.vmem [shape: f32[3], index: 0, kind: input, shape index: {}]
  %s1 = inlined_call_operand.vmem [shape: f32[98], index: 1, kind: input, shape index: {}]
  %s2 = inlined_call_operand.vmem [shape: f32[2,16,256], index: 2, kind: input, shape index: {}]
  %s3 = inlined_call_operand.vmem [shape: f32[2,16,256], index: 3, kind: output, shape index: {}]
  %s4 = sld [smem:[#allocation0]]
  $region53: #{cbam_forward.1} parent=0
    _
  %s6 = ssub.s32 1, %s4
  %s7 = scalar_select 0, %s6, %s4
  $region1: #{cbam_forward.1} parent=0
    #allocation2 [shape = 'u8[512]{0}', space=smem, size = 0x200, scoped, tag = 'input window, operand 0, single buffered']
    #allocation3 [shape = 's32[2]{0}', space=sflag, size = 0x8, scoped, tag = 'scoped memory for cbam_forward.1']
    #allocation4 [shape = 'u8[512]{0}', space=smem, size = 0x200, scoped, tag = 'input window, operand 1, single buffered']
    #allocation5 [shape = 's32[1]{0}', space=sflag, size = 0x4, scoped, tag = 'scoped memory for cbam_forward.1']
    %8 = vsyncpa [#allocation3], 0
    %9 = vsyncpa [#allocation5], 0
    loop: start=0, step=1, limit=4
    $region2: #{cbam_forward.1} parent=1 // loop_pre_header
      _
    $region3: #{cbam_forward.1} parent=1 // loop_header
      %s11 = sphi 0, %s15
      %p12 = scmp.ge.s32.totalorder %s11, 4
      %s19 = sphi 0, %s19
      %s21 = sphi 0, %s19
      %s22 = sphi 0, %s21
      %s36 = sphi 0, %s22
      %s40 = sphi 0, %s40
      %s42 = sphi 0, %s40
      %s43 = sphi 0, %s42
      %s57 = sphi 0, %s43
      %s63 = sphi 0, %s65
      %s66 = sphi 0, %s63
      %s67 = sphi 0, %s66
      %s83 = sphi 0, %s67
      %s89 = sphi 0, %s91
      %s92 = sphi 0, %s89
      %s93 = sphi 0, %s92
      %s109 = sphi 0, %s93
    $region4: #{cbam_forward.1} parent=1 // loop_header_branch
      %14 = sbr.rel (%p12) target = $region8
    $region5: #{cbam_forward.1} parent=1 // loop_body
      %s16 = ssub.s32 %s11, 1
      %s17 = ssub.s32 %s11, 2
      %s18 = sadd.s32 %s11, 1
      %s20 = sadd.s32 %s19, 1
      %p23 = scmp.eq.s32.totalorder %s11, 1
      %p24 = scmp.ne.s32.totalorder %s19, %s21
      %p25 = scmp.eq.s32.totalorder %s11, 0
      %p26 = por %p24, %p25
      %p27 = scmp.ne.s32.totalorder %s19, %s21
      %p28 = scmp.eq.s32.totalorder %s16, 1
      %p29 = por %p27, %p28
      %p30 = scmp.ne.s32.totalorder %s21, %s22
      %p31 = scmp.eq.s32.totalorder %s16, 0
      %p32 = por %p30, %p31
      %p33 = scmp.ne.s32.totalorder %s21, %s22
      %p34 = scmp.eq.s32.totalorder %s17, 1
      %p35 = por %p33, %p34
      %p37 = scmp.ne.s32.totalorder %s22, %s36
      %p38 = scmp.eq.s32.totalorder %s17, 0
      %p39 = por %p37, %p38
      %s41 = sadd.s32 %s40, 1
      %p44 = scmp.eq.s32.totalorder %s11, 1
      %p45 = scmp.ne.s32.totalorder %s40, %s42
      %p46 = scmp.eq.s32.totalorder %s11, 0
      %p47 = por %p45, %p46
      %p48 = scmp.ne.s32.totalorder %s40, %s42
      %p49 = scmp.eq.s32.totalorder %s16, 1
      %p50 = por %p48, %p49
      %p51 = scmp.ne.s32.totalorder %s42, %s43
      %p52 = scmp.eq.s32.totalorder %s16, 0
      %p53 = por %p51, %p52
      %p54 = scmp.ne.s32.totalorder %s42, %s43
      %p55 = scmp.eq.s32.totalorder %s17, 1
      %p56 = por %p54, %p55
      %p58 = scmp.ne.s32.totalorder %s43, %s57
      %p59 = scmp.eq.s32.totalorder %s17, 0
      %p60 = por %p58, %p59
      %s61 = ssub.s32 %s11, %s18
      %p62 = scmp.eq.s32.totalorder %s61, 0
      %s64 = sadd.s32 %s63, 1
      %s65 = scalar_select %p62, %s63, %s64
      %p68 = pneg %p62
      %p69 = scmp.eq.s32.totalorder %s11, 1
      %p70 = por %p68, %p69
      %p71 = scmp.ne.s32.totalorder %s63, %s66
      %p72 = scmp.eq.s32.totalorder %s11, 0
      %p73 = por %p71, %p72
      %p74 = scmp.ne.s32.totalorder %s63, %s66
      %p75 = scmp.eq.s32.totalorder %s16, 1
      %p76 = por %p74, %p75
      %p77 = scmp.ne.s32.totalorder %s66, %s67
      %p78 = scmp.eq.s32.totalorder %s16, 0
      %p79 = por %p77, %p78
      %p80 = scmp.ne.s32.totalorder %s66, %s67
      %p81 = scmp.eq.s32.totalorder %s17, 1
      %p82 = por %p80, %p81
      %p84 = scmp.ne.s32.totalorder %s67, %s83
      %p85 = scmp.eq.s32.totalorder %s17, 0
      %p86 = por %p84, %p85
      %s87 = ssub.s32 %s11, %s18
      %p88 = scmp.eq.s32.totalorder %s87, 0
      %s90 = sadd.s32 %s89, 1
      %s91 = scalar_select %p88, %s89, %s90
      %p94 = pneg %p88
      %p95 = scmp.eq.s32.totalorder %s11, 1
      %p96 = por %p94, %p95
      %p97 = scmp.ne.s32.totalorder %s89, %s92
      %p98 = scmp.eq.s32.totalorder %s11, 0
      %p99 = por %p97, %p98
      %p100 = scmp.ne.s32.totalorder %s89, %s92
      %p101 = scmp.eq.s32.totalorder %s16, 1
      %p102 = por %p100, %p101
      %p103 = scmp.ne.s32.totalorder %s92, %s93
      %p104 = scmp.eq.s32.totalorder %s16, 0
      %p105 = por %p103, %p104
      %p106 = scmp.ne.s32.totalorder %s92, %s93
      %p107 = scmp.eq.s32.totalorder %s17, 1
      %p108 = por %p106, %p107
      %p110 = scmp.ne.s32.totalorder %s93, %s109
      %p111 = scmp.eq.s32.totalorder %s17, 0
      %p112 = por %p110, %p111
      %p113 = scmp.le.s32.totalorder 1, %s11
      %p114 = scmp.lt.s32.totalorder %s11, 3
      %p115 = pnand %p113, %p114
      %p116 = pneg %p115
      // Predicated region
      $region9: #{cbam_forward.1} parent=5 // pred_check
        _
      $region10: #{cbam_forward.1} parent=5 // pred_check_branch
        %118 = sbr.rel (%p115) target = $region12
      $region11: #{cbam_forward.1} parent=5 // pred_region
        %s119 = ssub.s32 %s11, 1
        // Predicated region
        $region13: #{cbam_forward.1} parent=11 // pred_check
          %p120 = pneg %p32
        $region14: #{cbam_forward.1} parent=11 // pred_check_branch
          %122 = sbr.rel (%p120) target = $region16
        $region15: #{cbam_forward.1} parent=11 // pred_region
          %s124 = ssub.s32 16, 16
          %125 = vsyncadd [#allocation3], %s124
          %s127 = sshll.u32 %s0, 4
          %s128 = int_to_ptr.vmem [resolvable:$true] %s127
          %130 = dma.vmem_to_smem %s128, 16, [#allocation2], [#allocation3]
        $region16: #{cbam_forward.1} parent=11 // pred_fallthru
          _
        // Predicated region
        $region17: #{cbam_forward.1} parent=11 // pred_check
          %p131 = pneg %p53
        $region18: #{cbam_forward.1} parent=11 // pred_check_branch
          %133 = sbr.rel (%p131) target = $region20
        $region19: #{cbam_forward.1} parent=11 // pred_region
          %s135 = ssub.s32 16, 16
          %136 = vsyncadd [#allocation5], %s135
          %s138 = sshll.u32 %s1, 4
          %s139 = int_to_ptr.vmem [resolvable:$true] %s138
          %141 = dma.vmem_to_smem %s139, 16, [#allocation4], [#allocation5]
        $region20: #{cbam_forward.1} parent=11 // pred_fallthru
          _
      $region12: #{cbam_forward.1} parent=5 // pred_fallthru
        _
      %p142 = scmp.lt.s32.totalorder %s11, 2
      // Predicated region
      $region21: #{cbam_forward.1} parent=5 // pred_check
        %p143 = pneg %p142
      $region22: #{cbam_forward.1} parent=5 // pred_check_branch
        %145 = sbr.rel (%p143) target = $region24
      $region23: #{cbam_forward.1} parent=5 // pred_region
        // Predicated region
        $region25: #{cbam_forward.1} parent=23 // pred_check
          %p146 = pneg %p73
        $region26: #{cbam_forward.1} parent=23 // pred_check_branch
          %148 = sbr.rel (%p146) target = $region28
        $region27: #{cbam_forward.1} parent=23 // pred_region
          %p149 = scmp.lt.s32.totalorder %s11, 1
          %s150 = scalar_select %p149, %s11, 1
          %s151 = smul.addr %s150, 4
          %s152 = smul.addr %s151, 8
          %s153 = scalar_lea.vmem %s2, %s152
        $region28: #{cbam_forward.1} parent=23 // pred_fallthru
          _
      $region24: #{cbam_forward.1} parent=5 // pred_fallthru
        _
      %p154 = scmp.le.s32.totalorder 1, %s11
      %p155 = scmp.lt.s32.totalorder %s11, 3
      %p156 = pnand %p154, %p155
      %p157 = pneg %p156
      // Predicated region
      $region29: #{cbam_forward.1} parent=5 // pred_check
        _
      $region30: #{cbam_forward.1} parent=5 // pred_check_branch
        %159 = sbr.rel (%p156) target = $region32
      $region31: #{cbam_forward.1} parent=5 // pred_region
        %s160 = ssub.s32 %s11, 1
        // Predicated region
        $region33: #{cbam_forward.1} parent=31 // pred_check
          %p161 = pneg %p32
        $region34: #{cbam_forward.1} parent=31 // pred_check_branch
          %163 = sbr.rel (%p161) target = $region36
        $region35: #{cbam_forward.1} parent=31 // pred_region
          %164 = dma.done [#allocation3], 16
        $region36: #{cbam_forward.1} parent=31 // pred_fallthru
          _
        // Predicated region
        $region37: #{cbam_forward.1} parent=31 // pred_check
          %p165 = pneg %p53
        $region38: #{cbam_forward.1} parent=31 // pred_check_branch
          %167 = sbr.rel (%p165) target = $region40
        $region39: #{cbam_forward.1} parent=31 // pred_region
          %168 = dma.done [#allocation5], 16
        $region40: #{cbam_forward.1} parent=31 // pred_fallthru
          _
        %169 = sfence
        %p170 = pneg %p32
        %p171 = pneg %p29
        %p172 = pneg %p53
        %p173 = pneg %p50
        %p174 = scmp.lt.s32.totalorder %s16, 1
        %s175 = scalar_select %p174, %s16, 1
        %s176 = smul.addr %s175, 4
        %s177 = smul.addr %s176, 8
        %s178 = scalar_lea.vmem %s2, %s177
        %p179 = pneg %p79
        %p180 = pneg %p76
        %p181 = pneg %p105
        %p182 = pneg %p102
        %p183 = scmp.lt.s32.totalorder %s16, 1
        %s184 = scalar_select %p183, %s16, 1
        %s185 = smul.addr %s184, 4
        %s186 = smul.addr %s185, 8
        %s187 = scalar_lea.vmem %s3, %s186
        %p188 = scmp.lt.s32.totalorder %s16, 1
        %s189 = scalar_select %p188, %s16, 1
        %s190 = smul.addr %s189, 4
        %s191 = smul.addr %s190, 8
        %s192 = scalar_lea.vmem %s2, %s191
        %p193 = scmp.lt.s32.totalorder %s16, 1
        %s194 = scalar_select %p193, %s16, 1
        %s195 = smul.addr %s194, 4
        %s196 = smul.addr %s195, 8
        %s197 = scalar_lea.vmem %s3, %s196
        %v198 = vld [vmem:[%s192] sm:$0xff]
        %v199 = vld [vmem:[%s192 + $0x8] sm:$0xff]
        %v200 = vld [vmem:[%s192 + $0x10] sm:$0xff]
        %v201 = vld [vmem:[%s192 + $0x18] sm:$0xff]
        %v202 = vadd.f32 %v198, %v199
        %203 = vadd.xlane.f32.xlu0 %v202
        %v204 = vpop.xlane.xlu0 %203
        %v205 = vadd.f32 %v200, %v201
        %206 = vadd.xlane.f32.xlu0 %v205
        %v207 = vpop.xlane.xlu0 %206
        %v208 = vrcp.pop 256.0
        %v209 = vmul.f32 %v204, %v208
        %v210 = vmul.f32 %v207, %v208
        %v211 = vmax.f32 %v198, %v199
        %212 = vmax.xlane.f32.xlu0 %v211
        %v213 = vpop.xlane.xlu0 %212
        %v214 = vmax.f32 %v200, %v201
        %215 = vmax.xlane.f32.xlu0 %v214
        %v216 = vpop.xlane.xlu0 %215
        %v217 = vadd.f32 %v209, %v213
        %v218 = vadd.f32 %v210, %v216
        %s219 = sld [smem:[#allocation2]]
        %vm222 = vcmask 1040384
        %v223 = vrot.slane %v217, 7
        %v224 = vrot.slane %v218, 7
        %v225 = vsel %vm222, %v223, %v224
        %v228 = vsel %vm222, 0.0, %v223
        %v229 = vstv %s219
        %v230 = vmul.f32 %v229, %v228
        %v231 = vmul.f32 %v229, %v225
        %v232 = vadd.f32 %v230, 0.0
        %v233 = vadd.f32 %v231, 0.0
        %s234 = sld [smem:[#allocation2 + $0x1]]
        %v235 = vstv %s234
        %v236 = vmul.f32 %v235, %v217
        %v237 = vmul.f32 %v235, %v218
        %v238 = vadd.f32 %v232, %v236
        %v239 = vadd.f32 %v233, %v237
        %s240 = sld [smem:[#allocation2 + $0x2]]
        %vm241 = vcmask 1046528
        %v242 = vrot.slane %v217, 1
        %v243 = vrot.slane %v218, 1
        %v244 = vsel %vm241, %v242, %v243
        %v247 = vsel %vm241, %v243, 0.0
        %v248 = vstv %s240
        %v249 = vmul.f32 %v248, %v244
        %v250 = vmul.f32 %v248, %v247
        %v251 = vadd.f32 %v238, %v249
        %v252 = vadd.f32 %v239, %v250
        %v253 = vxor.u32 %v251, 2147483648
        %v254 = vxor.u32 %v252, 2147483648
        %v255 = vmul.f32 %v253, 1.442695
        %v256 = vpow.pop %v255
        %v257 = vmul.f32 %v254, 1.442695
        %v258 = vpow.pop %v257
        %v259 = vadd.f32 %v256, 1.0
        %v260 = vadd.f32 %v258, 1.0
        %v261 = vrcp.pop %v259
        %v262 = vmul.f32 1.0, %v261
        %v263 = vrcp.pop %v260
        %v264 = vmul.f32 1.0, %v263
        %266 = vset.pattern.permute.xlu0 0
        %267 = vperm.xlu0 %266, %v262
        %v268 = vpop.permute.xlu0 %267
        %271 = vset.pattern.permute.xlu0 0
        %272 = vperm.xlu0 %271, %v264
        %v273 = vpop.permute.xlu0 %272
        %v275 = vmul.f32 %v198, %v268
        %v276 = vmul.f32 %v199, %v268
        %v277 = vmul.f32 %v200, %v273
        %v278 = vmul.f32 %v201, %v273
        %v279 = vmax.f32 %v275, %v277
        %v280 = vrot.slane %v279, 4
        %v281 = vmax.f32 %v279, %v280
        %v282 = vrot.slane %v281, 2
        %v283 = vmax.f32 %v281, %v282
        %v284 = vrot.slane %v283, 1
        %v285 = vmax.f32 %v283, %v284
        %v286 = vmax.f32 %v276, %v278
        %v287 = vrot.slane %v286, 4
        %v288 = vmax.f32 %v286, %v287
        %v289 = vrot.slane %v288, 2
        %v290 = vmax.f32 %v288, %v289
        %v291 = vrot.slane %v290, 1
        %v292 = vmax.f32 %v290, %v291
        %v293 = vadd.f32 %v275, %v277
        %v294 = vrot.slane %v293, 4
        %v295 = vadd.f32 %v293, %v294
        %v296 = vrot.slane %v295, 2
        %v297 = vadd.f32 %v295, %v296
        %v298 = vrot.slane %v297, 1
        %v299 = vadd.f32 %v297, %v298
        %v300 = vadd.f32 %v276, %v278
        %v301 = vrot.slane %v300, 4
        %v302 = vadd.f32 %v300, %v301
        %v303 = vrot.slane %v302, 2
        %v304 = vadd.f32 %v302, %v303
        %v305 = vrot.slane %v304, 1
        %v306 = vadd.f32 %v304, %v305
        %v307 = vrcp.pop 16.0
        %v308 = vmul.f32 %v299, %v307
        %v309 = vmul.f32 %v306, %v307
        %312 = vrot.lane.b32.xlu0 %v285, 48
        %v313 = vpop.permute.xlu0 %312
        %314 = vrot.lane.b32.xlu0 %v292, 48
        %v315 = vpop.permute.xlu0 %314
        %vm316 = vcmask 392192
        %v317 = vsel %vm316, %v313, %v315
        %v320 = vsel %vm316, 0.0, %v313
        %321 = vrot.lane.b32.xlu0 %v285, 32
        %v322 = vpop.permute.xlu0 %321
        %323 = vrot.lane.b32.xlu0 %v292, 32
        %v324 = vpop.permute.xlu0 %323
        %vm325 = vcmask 261120
        %v326 = vsel %vm325, %v322, %v324
        %v329 = vsel %vm325, 0.0, %v322
        %330 = vrot.lane.b32.xlu0 %v285, 16
        %v331 = vpop.permute.xlu0 %330
        %332 = vrot.lane.b32.xlu0 %v292, 16
        %v333 = vpop.permute.xlu0 %332
        %vm334 = vcmask 130048
        %v335 = vsel %vm334, %v331, %v333
        %v338 = vsel %vm334, 0.0, %v331
        %339 = vrot.lane.b32.xlu0 %v285, 112
        %v340 = vpop.permute.xlu0 %339
        %341 = vrot.lane.b32.xlu0 %v292, 112
        %v342 = vpop.permute.xlu0 %341
        %vm343 = vcmask 916480
        %v344 = vsel %vm343, %v340, %v342
        %v347 = vsel %vm343, %v342, 0.0
        %348 = vrot.lane.b32.xlu0 %v285, 96
        %v349 = vpop.permute.xlu0 %348
        %350 = vrot.lane.b32.xlu0 %v292, 96
        %v351 = vpop.permute.xlu0 %350
        %vm352 = vcmask 785408
        %v353 = vsel %vm352, %v349, %v351
        %v356 = vsel %vm352, %v351, 0.0
        %357 = vrot.lane.b32.xlu0 %v285, 80
        %v358 = vpop.permute.xlu0 %357
        %359 = vrot.lane.b32.xlu0 %v292, 80
        %v360 = vpop.permute.xlu0 %359
        %vm361 = vcmask 654336
        %v362 = vsel %vm361, %v358, %v360
        %v365 = vsel %vm361, %v360, 0.0
        %368 = vrot.lane.b32.xlu0 %v308, 48
        %v369 = vpop.permute.xlu0 %368
        %370 = vrot.lane.b32.xlu0 %v309, 48
        %v371 = vpop.permute.xlu0 %370
        %v372 = vsel %vm316, %v369, %v371
        %v375 = vsel %vm316, 0.0, %v369
        %376 = vrot.lane.b32.xlu0 %v308, 32
        %v377 = vpop.permute.xlu0 %376
        %378 = vrot.lane.b32.xlu0 %v309, 32
        %v379 = vpop.permute.xlu0 %378
        %v380 = vsel %vm325, %v377, %v379
        %v383 = vsel %vm325, 0.0, %v377
        %384 = vrot.lane.b32.xlu0 %v308, 16
        %v385 = vpop.permute.xlu0 %384
        %386 = vrot.lane.b32.xlu0 %v309, 16
        %v387 = vpop.permute.xlu0 %386
        %v388 = vsel %vm334, %v385, %v387
        %v391 = vsel %vm334, 0.0, %v385
        %392 = vrot.lane.b32.xlu0 %v308, 112
        %v393 = vpop.permute.xlu0 %392
        %394 = vrot.lane.b32.xlu0 %v309, 112
        %v395 = vpop.permute.xlu0 %394
        %v396 = vsel %vm343, %v393, %v395
        %v399 = vsel %vm343, %v395, 0.0
        %400 = vrot.lane.b32.xlu0 %v308, 96
        %v401 = vpop.permute.xlu0 %400
        %402 = vrot.lane.b32.xlu0 %v309, 96
        %v403 = vpop.permute.xlu0 %402
        %v404 = vsel %vm352, %v401, %v403
        %v407 = vsel %vm352, %v403, 0.0
        %408 = vrot.lane.b32.xlu0 %v308, 80
        %v409 = vpop.permute.xlu0 %408
        %410 = vrot.lane.b32.xlu0 %v309, 80
        %v411 = vpop.permute.xlu0 %410
        %v412 = vsel %vm361, %v409, %v411
        %v415 = vsel %vm361, %v411, 0.0
        %v416 = vlaneseq
        %v417 = vand.u32 %v416, 127
        %v418 = vadd.s32 %v417, 128
        %vm419 = vcmp.lt.s32.totalorder %v417, 0
        %v420 = vsub.s32 0, %v417
        %v421 = vsel %vm419, %v420, %v417
        %v422 = vshrl.u32 %v421, 4
        %v423 = vand.u32 %v421, 15
        %v424 = vsub.s32 0, %v423
        %v425 = vsel %vm419, %v424, %v423
        %vm426 = vcmp.lt.s32.totalorder %v418, 0
        %v427 = vsub.s32 0, %v418
        %v428 = vsel %vm426, %v427, %v418
        %v429 = vshrl.u32 %v428, 4
        %v430 = vand.u32 %v428, 15
        %v431 = vsub.s32 0, %v430
        %v432 = vsel %vm426, %v431, %v430
        %vm433 = vcmp.ne.s32.totalorder %v425, 0
        %vm434 = vcmp.ne.s32.totalorder %v432, 0
        %vm435 = vcmp.lt.s32.totalorder %v425, 0
        %vm436 = vcmp.lt.s32.totalorder %v432, 0
        %vm437 = vmand %vm435, %vm433
        %vm438 = vmand %vm436, %vm434
        %v439 = vadd.s32 %v425, 16
        %v440 = vadd.s32 %v432, 16
        %v441 = vsel %vm437, %v439, %v425
        %v442 = vsel %vm438, %v440, %v432
        %s443 = sld [smem:[#allocation4]]
        %v444 = vstv %s443
        %v445 = vmul.f32 %v444, %v320
        %v446 = vmul.f32 %v444, %v317
        %s447 = sld [smem:[#allocation4 + $0x31]]
        %v448 = vstv %s447
        %v449 = vmul.f32 %v448, %v375
        %v450 = vmul.f32 %v448, %v372
        %v451 = vadd.f32 %v445, %v449
        %v452 = vadd.f32 %v446, %v450
        %v453 = vadd.f32 %v451, 0.0
        %v454 = vadd.f32 %v452, 0.0
        %s455 = sld [smem:[#allocation4 + $0x7]]
        %v456 = vstv %s455
        %v457 = vmul.f32 %v456, %v329
        %v458 = vmul.f32 %v456, %v326
        %s459 = sld [smem:[#allocation4 + $0x38]]
        %v460 = vstv %s459
        %v461 = vmul.f32 %v460, %v383
        %v462 = vmul.f32 %v460, %v380
        %v463 = vadd.f32 %v457, %v461
        %v464 = vadd.f32 %v458, %v462
        %v465 = vadd.f32 %v463, 0.0
        %v466 = vadd.f32 %v464, 0.0
        %s467 = sld [smem:[#allocation4 + $0xe]]
        %v468 = vstv %s467
        %v469 = vmul.f32 %v468, %v338
        %v470 = vmul.f32 %v468, %v335
        %s471 = sld [smem:[#allocation4 + $0x3f]]
        %v472 = vstv %s471
        %v473 = vmul.f32 %v472, %v391
        %v474 = vmul.f32 %v472, %v388
        %v475 = vadd.f32 %v469, %v473
        %v476 = vadd.f32 %v470, %v474
        %v477 = vadd.f32 %v453, %v475
        %v478 = vadd.f32 %v454, %v476
        %s479 = sld [smem:[#allocation4 + $0x15]]
        %v480 = vstv %s479
        %v481 = vmul.f32 %v480, %v285
        %v482 = vmul.f32 %v480, %v292
        %s483 = sld [smem:[#allocation4 + $0x46]]
        %v484 = vstv %s483
        %v485 = vmul.f32 %v484, %v308
        %v486 = vmul.f32 %v484, %v309
        %v487 = vadd.f32 %v481, %v485
        %v488 = vadd.f32 %v482, %v486
        %v489 = vadd.f32 %v465, %v487
        %v490 = vadd.f32 %v466, %v488
        %s491 = sld [smem:[#allocation4 + $0x1c]]
        %v492 = vstv %s491
        %v493 = vmul.f32 %v492, %v344
        %v494 = vmul.f32 %v492, %v347
        %s495 = sld [smem:[#allocation4 + $0x4d]]
        %v496 = vstv %s495
        %v497 = vmul.f32 %v496, %v396
        %v498 = vmul.f32 %v496, %v399
        %v499 = vadd.f32 %v493, %v497
        %v500 = vadd.f32 %v494, %v498
        %v501 = vadd.f32 %v477, %v499
        %v502 = vadd.f32 %v478, %v500
        %s503 = sld [smem:[#allocation4 + $0x23]]
        %v504 = vstv %s503
        %v505 = vmul.f32 %v504, %v353
        %v506 = vmul.f32 %v504, %v356
        %s507 = sld [smem:[#allocation4 + $0x54]]
        %v508 = vstv %s507
        %v509 = vmul.f32 %v508, %v404
        %v510 = vmul.f32 %v508, %v407
        %v511 = vadd.f32 %v505, %v509
        %v512 = vadd.f32 %v506, %v510
        %v513 = vadd.f32 %v489, %v511
        %v514 = vadd.f32 %v490, %v512
        %s515 = sld [smem:[#allocation4 + $0x2a]]
        %v516 = vstv %s515
        %v517 = vmul.f32 %v516, %v362
        %v518 = vmul.f32 %v516, %v365
        %s519 = sld [smem:[#allocation4 + $0x5b]]
        %v520 = vstv %s519
        %v521 = vmul.f32 %v520, %v412
        %v522 = vmul.f32 %v520, %v415
        %v523 = vadd.f32 %v517, %v521
        %v524 = vadd.f32 %v518, %v522
        %v525 = vadd.f32 %v501, %v523
        %v526 = vadd.f32 %v502, %v524
        %v527 = vadd.f32 %v525, %v513
        %v528 = vadd.f32 %v526, %v514
        %531 = vrot.lane.b32.xlu0 %v527, 3
        %v532 = vpop.permute.xlu0 %531
        %533 = vrot.lane.b32.xlu0 %v528, 3
        %v534 = vpop.permute.xlu0 %533
        %vm535 = vcmask 23552
        %v536 = vsel %vm535, %v532, %v534
        %v539 = vsel %vm535, 0.0, %v532
        %v540 = vadd.s32 %v441, 4294967293
        %v541 = vadd.s32 %v442, 4294967293
        %vm542 = vcmp.ge.s32.totalorder %v540, 0
        %vm543 = vcmp.ge.s32.totalorder %v541, 0
        %vm544 = vcmp.lt.s32.totalorder %v540, 16
        %vm545 = vcmp.lt.s32.totalorder %v541, 16
        %vm546 = vmand %vm542, %vm544
        %vm547 = vmand %vm543, %vm545
        %v548 = vsel %vm546, %v539, 0.0
        %v549 = vsel %vm547, %v536, 0.0
        %s550 = sld [smem:[#allocation4 + $0x1]]
        %v551 = vstv %s550
        %v552 = vmul.f32 %v551, %v320
        %v553 = vmul.f32 %v551, %v317
        %s554 = sld [smem:[#allocation4 + $0x32]]
        %v555 = vstv %s554
        %v556 = vmul.f32 %v555, %v375
        %v557 = vmul.f32 %v555, %v372
        %v558 = vadd.f32 %v552, %v556
        %v559 = vadd.f32 %v553, %v557
        %v560 = vadd.f32 %v558, 0.0
        %v561 = vadd.f32 %v559, 0.0
        %s562 = sld [smem:[#allocation4 + $0x8]]
        %v563 = vstv %s562
        %v564 = vmul.f32 %v563, %v329
        %v565 = vmul.f32 %v563, %v326
        %s566 = sld [smem:[#allocation4 + $0x39]]
        %v567 = vstv %s566
        %v568 = vmul.f32 %v567, %v383
        %v569 = vmul.f32 %v567, %v380
        %v570 = vadd.f32 %v564, %v568
        %v571 = vadd.f32 %v565, %v569
        %v572 = vadd.f32 %v570, 0.0
        %v573 = vadd.f32 %v571, 0.0
        %s574 = sld [smem:[#allocation4 + $0xf]]
        %v575 = vstv %s574
        %v576 = vmul.f32 %v575, %v338
        %v577 = vmul.f32 %v575, %v335
        %s578 = sld [smem:[#allocation4 + $0x40]]
        %v579 = vstv %s578
        %v580 = vmul.f32 %v579, %v391
        %v581 = vmul.f32 %v579, %v388
        %v582 = vadd.f32 %v576, %v580
        %v583 = vadd.f32 %v577, %v581
        %v584 = vadd.f32 %v560, %v582
        %v585 = vadd.f32 %v561, %v583
        %s586 = sld [smem:[#allocation4 + $0x16]]
        %v587 = vstv %s586
        %v588 = vmul.f32 %v587, %v285
        %v589 = vmul.f32 %v587, %v292
        %s590 = sld [smem:[#allocation4 + $0x47]]
        %v591 = vstv %s590
        %v592 = vmul.f32 %v591, %v308
        %v593 = vmul.f32 %v591, %v309
        %v594 = vadd.f32 %v588, %v592
        %v595 = vadd.f32 %v589, %v593
        %v596 = vadd.f32 %v572, %v594
        %v597 = vadd.f32 %v573, %v595
        %s598 = sld [smem:[#allocation4 + $0x1d]]
        %v599 = vstv %s598
        %v600 = vmul.f32 %v599, %v344
        %v601 = vmul.f32 %v599, %v347
        %s602 = sld [smem:[#allocation4 + $0x4e]]
        %v603 = vstv %s602
        %v604 = vmul.f32 %v603, %v396
        %v605 = vmul.f32 %v603, %v399
        %v606 = vadd.f32 %v600, %v604
        %v607 = vadd.f32 %v601, %v605
        %v608 = vadd.f32 %v584, %v606
        %v609 = vadd.f32 %v585, %v607
        %s610 = sld [smem:[#allocation4 + $0x24]]
        %v611 = vstv %s610
        %v612 = vmul.f32 %v611, %v353
        %v613 = vmul.f32 %v611, %v356
        %s614 = sld [smem:[#allocation4 + $0x55]]
        %v615 = vstv %s614
        %v616 = vmul.f32 %v615, %v404
        %v617 = vmul.f32 %v615, %v407
        %v618 = vadd.f32 %v612, %v616
        %v619 = vadd.f32 %v613, %v617
        %v620 = vadd.f32 %v596, %v618
        %v621 = vadd.f32 %v597, %v619
        %s622 = sld [smem:[#allocation4 + $0x2b]]
        %v623 = vstv %s622
        %v624 = vmul.f32 %v623, %v362
        %v625 = vmul.f32 %v623, %v365
        %s626 = sld [smem:[#allocation4 + $0x5c]]
        %v627 = vstv %s626
        %v628 = vmul.f32 %v627, %v412
        %v629 = vmul.f32 %v627, %v415
        %v630 = vadd.f32 %v624, %v628
        %v631 = vadd.f32 %v625, %v629
        %v632 = vadd.f32 %v608, %v630
        %v633 = vadd.f32 %v609, %v631
        %v634 = vadd.f32 %v632, %v620
        %v635 = vadd.f32 %v633, %v621
        %638 = vrot.lane.b32.xlu0 %v634, 2
        %v639 = vpop.permute.xlu0 %638
        %640 = vrot.lane.b32.xlu0 %v635, 2
        %v641 = vpop.permute.xlu0 %640
        %vm642 = vcmask 15360
        %v643 = vsel %vm642, %v639, %v641
        %v646 = vsel %vm642, 0.0, %v639
        %v647 = vadd.s32 %v441, 4294967294
        %v648 = vadd.s32 %v442, 4294967294
        %vm649 = vcmp.ge.s32.totalorder %v647, 0
        %vm650 = vcmp.ge.s32.totalorder %v648, 0
        %vm651 = vcmp.lt.s32.totalorder %v647, 16
        %vm652 = vcmp.lt.s32.totalorder %v648, 16
        %vm653 = vmand %vm649, %vm651
        %vm654 = vmand %vm650, %vm652
        %v655 = vsel %vm653, %v646, 0.0
        %v656 = vsel %vm654, %v643, 0.0
        %s657 = sld [smem:[#allocation4 + $0x2]]
        %v658 = vstv %s657
        %v659 = vmul.f32 %v658, %v320
        %v660 = vmul.f32 %v658, %v317
        %s661 = sld [smem:[#allocation4 + $0x33]]
        %v662 = vstv %s661
        %v663 = vmul.f32 %v662, %v375
        %v664 = vmul.f32 %v662, %v372
        %v665 = vadd.f32 %v659, %v663
        %v666 = vadd.f32 %v660, %v664
        %v667 = vadd.f32 %v665, 0.0
        %v668 = vadd.f32 %v666, 0.0
        %s669 = sld [smem:[#allocation4 + $0x9]]
        %v670 = vstv %s669
        %v671 = vmul.f32 %v670, %v329
        %v672 = vmul.f32 %v670, %v326
        %s673 = sld [smem:[#allocation4 + $0x3a]]
        %v674 = vstv %s673
        %v675 = vmul.f32 %v674, %v383
        %v676 = vmul.f32 %v674, %v380
        %v677 = vadd.f32 %v671, %v675
        %v678 = vadd.f32 %v672, %v676
        %v679 = vadd.f32 %v677, 0.0
        %v680 = vadd.f32 %v678, 0.0
        %s681 = sld [smem:[#allocation4 + $0x10]]
        %v682 = vstv %s681
        %v683 = vmul.f32 %v682, %v338
        %v684 = vmul.f32 %v682, %v335
        %s685 = sld [smem:[#allocation4 + $0x41]]
        %v686 = vstv %s685
        %v687 = vmul.f32 %v686, %v391
        %v688 = vmul.f32 %v686, %v388
        %v689 = vadd.f32 %v683, %v687
        %v690 = vadd.f32 %v684, %v688
        %v691 = vadd.f32 %v667, %v689
        %v692 = vadd.f32 %v668, %v690
        %s693 = sld [smem:[#allocation4 + $0x17]]
        %v694 = vstv %s693
        %v695 = vmul.f32 %v694, %v285
        %v696 = vmul.f32 %v694, %v292
        %s697 = sld [smem:[#allocation4 + $0x48]]
        %v698 = vstv %s697
        %v699 = vmul.f32 %v698, %v308
        %v700 = vmul.f32 %v698, %v309
        %v701 = vadd.f32 %v695, %v699
        %v702 = vadd.f32 %v696, %v700
        %v703 = vadd.f32 %v679, %v701
        %v704 = vadd.f32 %v680, %v702
        %s705 = sld [smem:[#allocation4 + $0x1e]]
        %v706 = vstv %s705
        %v707 = vmul.f32 %v706, %v344
        %v708 = vmul.f32 %v706, %v347
        %s709 = sld [smem:[#allocation4 + $0x4f]]
        %v710 = vstv %s709
        %v711 = vmul.f32 %v710, %v396
        %v712 = vmul.f32 %v710, %v399
        %v713 = vadd.f32 %v707, %v711
        %v714 = vadd.f32 %v708, %v712
        %v715 = vadd.f32 %v691, %v713
        %v716 = vadd.f32 %v692, %v714
        %s717 = sld [smem:[#allocation4 + $0x25]]
        %v718 = vstv %s717
        %v719 = vmul.f32 %v718, %v353
        %v720 = vmul.f32 %v718, %v356
        %s721 = sld [smem:[#allocation4 + $0x56]]
        %v722 = vstv %s721
        %v723 = vmul.f32 %v722, %v404
        %v724 = vmul.f32 %v722, %v407
        %v725 = vadd.f32 %v719, %v723
        %v726 = vadd.f32 %v720, %v724
        %v727 = vadd.f32 %v703, %v725
        %v728 = vadd.f32 %v704, %v726
        %s729 = sld [smem:[#allocation4 + $0x2c]]
        %v730 = vstv %s729
        %v731 = vmul.f32 %v730, %v362
        %v732 = vmul.f32 %v730, %v365
        %s733 = sld [smem:[#allocation4 + $0x5d]]
        %v734 = vstv %s733
        %v735 = vmul.f32 %v734, %v412
        %v736 = vmul.f32 %v734, %v415
        %v737 = vadd.f32 %v731, %v735
        %v738 = vadd.f32 %v732, %v736
        %v739 = vadd.f32 %v715, %v737
        %v740 = vadd.f32 %v716, %v738
        %v741 = vadd.f32 %v739, %v727
        %v742 = vadd.f32 %v740, %v728
        %745 = vrot.lane.b32.xlu0 %v741, 1
        %v746 = vpop.permute.xlu0 %745
        %747 = vrot.lane.b32.xlu0 %v742, 1
        %v748 = vpop.permute.xlu0 %747
        %vm749 = vcmask 7168
        %v750 = vsel %vm749, %v746, %v748
        %v753 = vsel %vm749, 0.0, %v746
        %v754 = vadd.s32 %v441, 4294967295
        %v755 = vadd.s32 %v442, 4294967295
        %vm756 = vcmp.ge.s32.totalorder %v754, 0
        %vm757 = vcmp.ge.s32.totalorder %v755, 0
        %vm758 = vcmp.lt.s32.totalorder %v754, 16
        %vm759 = vcmp.lt.s32.totalorder %v755, 16
        %vm760 = vmand %vm756, %vm758
        %vm761 = vmand %vm757, %vm759
        %v762 = vsel %vm760, %v753, 0.0
        %v763 = vsel %vm761, %v750, 0.0
        %s764 = sld [smem:[#allocation4 + $0x3]]
        %v765 = vstv %s764
        %v766 = vmul.f32 %v765, %v320
        %v767 = vmul.f32 %v765, %v317
        %s768 = sld [smem:[#allocation4 + $0x34]]
        %v769 = vstv %s768
        %v770 = vmul.f32 %v769, %v375
        %v771 = vmul.f32 %v769, %v372
        %v772 = vadd.f32 %v766, %v770
        %v773 = vadd.f32 %v767, %v771
        %v774 = vadd.f32 %v772, 0.0
        %v775 = vadd.f32 %v773, 0.0
        %s776 = sld [smem:[#allocation4 + $0xa]]
        %v777 = vstv %s776
        %v778 = vmul.f32 %v777, %v329
        %v779 = vmul.f32 %v777, %v326
        %s780 = sld [smem:[#allocation4 + $0x3b]]
        %v781 = vstv %s780
        %v782 = vmul.f32 %v781, %v383
        %v783 = vmul.f32 %v781, %v380
        %v784 = vadd.f32 %v778, %v782
        %v785 = vadd.f32 %v779, %v783
        %v786 = vadd.f32 %v784, 0.0
        %v787 = vadd.f32 %v785, 0.0
        %s788 = sld [smem:[#allocation4 + $0x11]]
        %v789 = vstv %s788
        %v790 = vmul.f32 %v789, %v338
        %v791 = vmul.f32 %v789, %v335
        %s792 = sld [smem:[#allocation4 + $0x42]]
        %v793 = vstv %s792
        %v794 = vmul.f32 %v793, %v391
        %v795 = vmul.f32 %v793, %v388
        %v796 = vadd.f32 %v790, %v794
        %v797 = vadd.f32 %v791, %v795
        %v798 = vadd.f32 %v774, %v796
        %v799 = vadd.f32 %v775, %v797
        %s800 = sld [smem:[#allocation4 + $0x18]]
        %v801 = vstv %s800
        %v802 = vmul.f32 %v801, %v285
        %v803 = vmul.f32 %v801, %v292
        %s804 = sld [smem:[#allocation4 + $0x49]]
        %v805 = vstv %s804
        %v806 = vmul.f32 %v805, %v308
        %v807 = vmul.f32 %v805, %v309
        %v808 = vadd.f32 %v802, %v806
        %v809 = vadd.f32 %v803, %v807
        %v810 = vadd.f32 %v786, %v808
        %v811 = vadd.f32 %v787, %v809
        %s812 = sld [smem:[#allocation4 + $0x1f]]
        %v813 = vstv %s812
        %v814 = vmul.f32 %v813, %v344
        %v815 = vmul.f32 %v813, %v347
        %s816 = sld [smem:[#allocation4 + $0x50]]
        %v817 = vstv %s816
        %v818 = vmul.f32 %v817, %v396
        %v819 = vmul.f32 %v817, %v399
        %v820 = vadd.f32 %v814, %v818
        %v821 = vadd.f32 %v815, %v819
        %v822 = vadd.f32 %v798, %v820
        %v823 = vadd.f32 %v799, %v821
        %s824 = sld [smem:[#allocation4 + $0x26]]
        %v825 = vstv %s824
        %v826 = vmul.f32 %v825, %v353
        %v827 = vmul.f32 %v825, %v356
        %s828 = sld [smem:[#allocation4 + $0x57]]
        %v829 = vstv %s828
        %v830 = vmul.f32 %v829, %v404
        %v831 = vmul.f32 %v829, %v407
        %v832 = vadd.f32 %v826, %v830
        %v833 = vadd.f32 %v827, %v831
        %v834 = vadd.f32 %v810, %v832
        %v835 = vadd.f32 %v811, %v833
        %s836 = sld [smem:[#allocation4 + $0x2d]]
        %v837 = vstv %s836
        %v838 = vmul.f32 %v837, %v362
        %v839 = vmul.f32 %v837, %v365
        %s840 = sld [smem:[#allocation4 + $0x5e]]
        %v841 = vstv %s840
        %v842 = vmul.f32 %v841, %v412
        %v843 = vmul.f32 %v841, %v415
        %v844 = vadd.f32 %v838, %v842
        %v845 = vadd.f32 %v839, %v843
        %v846 = vadd.f32 %v822, %v844
        %v847 = vadd.f32 %v823, %v845
        %v848 = vadd.f32 %v846, %v834
        %v849 = vadd.f32 %v847, %v835
        %s850 = sld [smem:[#allocation4 + $0x4]]
        %v851 = vstv %s850
        %v852 = vmul.f32 %v851, %v320
        %v853 = vmul.f32 %v851, %v317
        %s854 = sld [smem:[#allocation4 + $0x35]]
        %v855 = vstv %s854
        %v856 = vmul.f32 %v855, %v375
        %v857 = vmul.f32 %v855, %v372
        %v858 = vadd.f32 %v852, %v856
        %v859 = vadd.f32 %v853, %v857
        %v860 = vadd.f32 %v858, 0.0
        %v861 = vadd.f32 %v859, 0.0
        %s862 = sld [smem:[#allocation4 + $0xb]]
        %v863 = vstv %s862
        %v864 = vmul.f32 %v863, %v329
        %v865 = vmul.f32 %v863, %v326
        %s866 = sld [smem:[#allocation4 + $0x3c]]
        %v867 = vstv %s866
        %v868 = vmul.f32 %v867, %v383
        %v869 = vmul.f32 %v867, %v380
        %v870 = vadd.f32 %v864, %v868
        %v871 = vadd.f32 %v865, %v869
        %v872 = vadd.f32 %v870, 0.0
        %v873 = vadd.f32 %v871, 0.0
        %s874 = sld [smem:[#allocation4 + $0x12]]
        %v875 = vstv %s874
        %v876 = vmul.f32 %v875, %v338
        %v877 = vmul.f32 %v875, %v335
        %s878 = sld [smem:[#allocation4 + $0x43]]
        %v879 = vstv %s878
        %v880 = vmul.f32 %v879, %v391
        %v881 = vmul.f32 %v879, %v388
        %v882 = vadd.f32 %v876, %v880
        %v883 = vadd.f32 %v877, %v881
        %v884 = vadd.f32 %v860, %v882
        %v885 = vadd.f32 %v861, %v883
        %s886 = sld [smem:[#allocation4 + $0x19]]
        %v887 = vstv %s886
        %v888 = vmul.f32 %v887, %v285
        %v889 = vmul.f32 %v887, %v292
        %s890 = sld [smem:[#allocation4 + $0x4a]]
        %v891 = vstv %s890
        %v892 = vmul.f32 %v891, %v308
        %v893 = vmul.f32 %v891, %v309
        %v894 = vadd.f32 %v888, %v892
        %v895 = vadd.f32 %v889, %v893
        %v896 = vadd.f32 %v872, %v894
        %v897 = vadd.f32 %v873, %v895
        %s898 = sld [smem:[#allocation4 + $0x20]]
        %v899 = vstv %s898
        %v900 = vmul.f32 %v899, %v344
        %v901 = vmul.f32 %v899, %v347
        %s902 = sld [smem:[#allocation4 + $0x51]]
        %v903 = vstv %s902
        %v904 = vmul.f32 %v903, %v396
        %v905 = vmul.f32 %v903, %v399
        %v906 = vadd.f32 %v900, %v904
        %v907 = vadd.f32 %v901, %v905
        %v908 = vadd.f32 %v884, %v906
        %v909 = vadd.f32 %v885, %v907
        %s910 = sld [smem:[#allocation4 + $0x27]]
        %v911 = vstv %s910
        %v912 = vmul.f32 %v911, %v353
        %v913 = vmul.f32 %v911, %v356
        %s914 = sld [smem:[#allocation4 + $0x58]]
        %v915 = vstv %s914
        %v916 = vmul.f32 %v915, %v404
        %v917 = vmul.f32 %v915, %v407
        %v918 = vadd.f32 %v912, %v916
        %v919 = vadd.f32 %v913, %v917
        %v920 = vadd.f32 %v896, %v918
        %v921 = vadd.f32 %v897, %v919
        %s922 = sld [smem:[#allocation4 + $0x2e]]
        %v923 = vstv %s922
        %v924 = vmul.f32 %v923, %v362
        %v925 = vmul.f32 %v923, %v365
        %s926 = sld [smem:[#allocation4 + $0x5f]]
        %v927 = vstv %s926
        %v928 = vmul.f32 %v927, %v412
        %v929 = vmul.f32 %v927, %v415
        %v930 = vadd.f32 %v924, %v928
        %v931 = vadd.f32 %v925, %v929
        %v932 = vadd.f32 %v908, %v930
        %v933 = vadd.f32 %v909, %v931
        %v934 = vadd.f32 %v932, %v920
        %v935 = vadd.f32 %v933, %v921
        %938 = vrot.lane.b32.xlu0 %v934, 127
        %v939 = vpop.permute.xlu0 %938
        %940 = vrot.lane.b32.xlu0 %v935, 127
        %v941 = vpop.permute.xlu0 %940
        %vm942 = vcmask 1039360
        %v943 = vsel %vm942, %v939, %v941
        %v946 = vsel %vm942, %v941, 0.0
        %v947 = vadd.s32 %v441, 1
        %v948 = vadd.s32 %v442, 1
        %vm949 = vcmp.ge.s32.totalorder %v947, 0
        %vm950 = vcmp.ge.s32.totalorder %v948, 0
        %vm951 = vcmp.lt.s32.totalorder %v947, 16
        %vm952 = vcmp.lt.s32.totalorder %v948, 16
        %vm953 = vmand %vm949, %vm951
        %vm954 = vmand %vm950, %vm952
        %v955 = vsel %vm953, %v943, 0.0
        %v956 = vsel %vm954, %v946, 0.0
        %s957 = sld [smem:[#allocation4 + $0x5]]
        %v958 = vstv %s957
        %v959 = vmul.f32 %v958, %v320
        %v960 = vmul.f32 %v958, %v317
        %s961 = sld [smem:[#allocation4 + $0x36]]
        %v962 = vstv %s961
        %v963 = vmul.f32 %v962, %v375
        %v964 = vmul.f32 %v962, %v372
        %v965 = vadd.f32 %v959, %v963
        %v966 = vadd.f32 %v960, %v964
        %v967 = vadd.f32 %v965, 0.0
        %v968 = vadd.f32 %v966, 0.0
        %s969 = sld [smem:[#allocation4 + $0xc]]
        %v970 = vstv %s969
        %v971 = vmul.f32 %v970, %v329
        %v972 = vmul.f32 %v970, %v326
        %s973 = sld [smem:[#allocation4 + $0x3d]]
        %v974 = vstv %s973
        %v975 = vmul.f32 %v974, %v383
        %v976 = vmul.f32 %v974, %v380
        %v977 = vadd.f32 %v971, %v975
        %v978 = vadd.f32 %v972, %v976
        %v979 = vadd.f32 %v977, 0.0
        %v980 = vadd.f32 %v978, 0.0
        %s981 = sld [smem:[#allocation4 + $0x13]]
        %v982 = vstv %s981
        %v983 = vmul.f32 %v982, %v338
        %v984 = vmul.f32 %v982, %v335
        %s985 = sld [smem:[#allocation4 + $0x44]]
        %v986 = vstv %s985
        %v987 = vmul.f32 %v986, %v391
        %v988 = vmul.f32 %v986, %v388
        %v989 = vadd.f32 %v983, %v987
        %v990 = vadd.f32 %v984, %v988
        %v991 = vadd.f32 %v967, %v989
        %v992 = vadd.f32 %v968, %v990
        %s993 = sld [smem:[#allocation4 + $0x1a]]
        %v994 = vstv %s993
        %v995 = vmul.f32 %v994, %v285
        %v996 = vmul.f32 %v994, %v292
        %s997 = sld [smem:[#allocation4 + $0x4b]]
        %v998 = vstv %s997
        %v999 = vmul.f32 %v998, %v308
        %v1000 = vmul.f32 %v998, %v309
        %v1001 = vadd.f32 %v995, %v999
        %v1002 = vadd.f32 %v996, %v1000
        %v1003 = vadd.f32 %v979, %v1001
        %v1004 = vadd.f32 %v980, %v1002
        %s1005 = sld [smem:[#allocation4 + $0x21]]
        %v1006 = vstv %s1005
        %v1007 = vmul.f32 %v1006, %v344
        %v1008 = vmul.f32 %v1006, %v347
        %s1009 = sld [smem:[#allocation4 + $0x52]]
        %v1010 = vstv %s1009
        %v1011 = vmul.f32 %v1010, %v396
        %v1012 = vmul.f32 %v1010, %v399
        %v1013 = vadd.f32 %v1007, %v1011
        %v1014 = vadd.f32 %v1008, %v1012
        %v1015 = vadd.f32 %v991, %v1013
        %v1016 = vadd.f32 %v992, %v1014
        %s1017 = sld [smem:[#allocation4 + $0x28]]
        %v1018 = vstv %s1017
        %v1019 = vmul.f32 %v1018, %v353
        %v1020 = vmul.f32 %v1018, %v356
        %s1021 = sld [smem:[#allocation4 + $0x59]]
        %v1022 = vstv %s1021
        %v1023 = vmul.f32 %v1022, %v404
        %v1024 = vmul.f32 %v1022, %v407
        %v1025 = vadd.f32 %v1019, %v1023
        %v1026 = vadd.f32 %v1020, %v1024
        %v1027 = vadd.f32 %v1003, %v1025
        %v1028 = vadd.f32 %v1004, %v1026
        %s1029 = sld [smem:[#allocation4 + $0x2f]]
        %v1030 = vstv %s1029
        %v1031 = vmul.f32 %v1030, %v362
        %v1032 = vmul.f32 %v1030, %v365
        %s1033 = sld [smem:[#allocation4 + $0x60]]
        %v1034 = vstv %s1033
        %v1035 = vmul.f32 %v1034, %v412
        %v1036 = vmul.f32 %v1034, %v415
        %v1037 = vadd.f32 %v1031, %v1035
        %v1038 = vadd.f32 %v1032, %v1036
        %v1039 = vadd.f32 %v1015, %v1037
        %v1040 = vadd.f32 %v1016, %v1038
        %v1041 = vadd.f32 %v1039, %v1027
        %v1042 = vadd.f32 %v1040, %v1028
        %1045 = vrot.lane.b32.xlu0 %v1041, 126
        %v1046 = vpop.permute.xlu0 %1045
        %1047 = vrot.lane.b32.xlu0 %v1042, 126
        %v1048 = vpop.permute.xlu0 %1047
        %vm1049 = vcmask 1031168
        %v1050 = vsel %vm1049, %v1046, %v1048
        %v1053 = vsel %vm1049, %v1048, 0.0
        %v1054 = vadd.s32 %v441, 2
        %v1055 = vadd.s32 %v442, 2
        %vm1056 = vcmp.ge.s32.totalorder %v1054, 0
        %vm1057 = vcmp.ge.s32.totalorder %v1055, 0
        %vm1058 = vcmp.lt.s32.totalorder %v1054, 16
        %vm1059 = vcmp.lt.s32.totalorder %v1055, 16
        %vm1060 = vmand %vm1056, %vm1058
        %vm1061 = vmand %vm1057, %vm1059
        %v1062 = vsel %vm1060, %v1050, 0.0
        %v1063 = vsel %vm1061, %v1053, 0.0
        %s1064 = sld [smem:[#allocation4 + $0x6]]
        %v1065 = vstv %s1064
        %v1066 = vmul.f32 %v1065, %v320
        %v1067 = vmul.f32 %v1065, %v317
        %s1068 = sld [smem:[#allocation4 + $0x37]]
        %v1069 = vstv %s1068
        %v1070 = vmul.f32 %v1069, %v375
        %v1071 = vmul.f32 %v1069, %v372
        %v1072 = vadd.f32 %v1066, %v1070
        %v1073 = vadd.f32 %v1067, %v1071
        %v1074 = vadd.f32 %v1072, 0.0
        %v1075 = vadd.f32 %v1073, 0.0
        %s1076 = sld [smem:[#allocation4 + $0xd]]
        %v1077 = vstv %s1076
        %v1078 = vmul.f32 %v1077, %v329
        %v1079 = vmul.f32 %v1077, %v326
        %s1080 = sld [smem:[#allocation4 + $0x3e]]
        %v1081 = vstv %s1080
        %v1082 = vmul.f32 %v1081, %v383
        %v1083 = vmul.f32 %v1081, %v380
        %v1084 = vadd.f32 %v1078, %v1082
        %v1085 = vadd.f32 %v1079, %v1083
        %v1086 = vadd.f32 %v1084, 0.0
        %v1087 = vadd.f32 %v1085, 0.0
        %s1088 = sld [smem:[#allocation4 + $0x14]]
        %v1089 = vstv %s1088
        %v1090 = vmul.f32 %v1089, %v338
        %v1091 = vmul.f32 %v1089, %v335
        %s1092 = sld [smem:[#allocation4 + $0x45]]
        %v1093 = vstv %s1092
        %v1094 = vmul.f32 %v1093, %v391
        %v1095 = vmul.f32 %v1093, %v388
        %v1096 = vadd.f32 %v1090, %v1094
        %v1097 = vadd.f32 %v1091, %v1095
        %v1098 = vadd.f32 %v1074, %v1096
        %v1099 = vadd.f32 %v1075, %v1097
        %s1100 = sld [smem:[#allocation4 + $0x1b]]
        %v1101 = vstv %s1100
        %v1102 = vmul.f32 %v1101, %v285
        %v1103 = vmul.f32 %v1101, %v292
        %s1104 = sld [smem:[#allocation4 + $0x4c]]
        %v1105 = vstv %s1104
        %v1106 = vmul.f32 %v1105, %v308
        %v1107 = vmul.f32 %v1105, %v309
        %v1108 = vadd.f32 %v1102, %v1106
        %v1109 = vadd.f32 %v1103, %v1107
        %v1110 = vadd.f32 %v1086, %v1108
        %v1111 = vadd.f32 %v1087, %v1109
        %s1112 = sld [smem:[#allocation4 + $0x22]]
        %v1113 = vstv %s1112
        %v1114 = vmul.f32 %v1113, %v344
        %v1115 = vmul.f32 %v1113, %v347
        %s1116 = sld [smem:[#allocation4 + $0x53]]
        %v1117 = vstv %s1116
        %v1118 = vmul.f32 %v1117, %v396
        %v1119 = vmul.f32 %v1117, %v399
        %v1120 = vadd.f32 %v1114, %v1118
        %v1121 = vadd.f32 %v1115, %v1119
        %v1122 = vadd.f32 %v1098, %v1120
        %v1123 = vadd.f32 %v1099, %v1121
        %s1124 = sld [smem:[#allocation4 + $0x29]]
        %v1125 = vstv %s1124
        %v1126 = vmul.f32 %v1125, %v353
        %v1127 = vmul.f32 %v1125, %v356
        %s1128 = sld [smem:[#allocation4 + $0x5a]]
        %v1129 = vstv %s1128
        %v1130 = vmul.f32 %v1129, %v404
        %v1131 = vmul.f32 %v1129, %v407
        %v1132 = vadd.f32 %v1126, %v1130
        %v1133 = vadd.f32 %v1127, %v1131
        %v1134 = vadd.f32 %v1110, %v1132
        %v1135 = vadd.f32 %v1111, %v1133
        %s1136 = sld [smem:[#allocation4 + $0x30]]
        %v1137 = vstv %s1136
        %v1138 = vmul.f32 %v1137, %v362
        %v1139 = vmul.f32 %v1137, %v365
        %s1140 = sld [smem:[#allocation4 + $0x61]]
        %v1141 = vstv %s1140
        %v1142 = vmul.f32 %v1141, %v412
        %v1143 = vmul.f32 %v1141, %v415
        %v1144 = vadd.f32 %v1138, %v1142
        %v1145 = vadd.f32 %v1139, %v1143
        %v1146 = vadd.f32 %v1122, %v1144
        %v1147 = vadd.f32 %v1123, %v1145
        %v1148 = vadd.f32 %v1146, %v1134
        %v1149 = vadd.f32 %v1147, %v1135
        %1152 = vrot.lane.b32.xlu0 %v1148, 125
        %v1153 = vpop.permute.xlu0 %1152
        %1154 = vrot.lane.b32.xlu0 %v1149, 125
        %v1155 = vpop.permute.xlu0 %1154
        %vm1156 = vcmask 1022976
        %v1157 = vsel %vm1156, %v1153, %v1155
        %v1160 = vsel %vm1156, %v1155, 0.0
        %v1161 = vadd.s32 %v441, 3
        %v1162 = vadd.s32 %v442, 3
        %vm1163 = vcmp.ge.s32.totalorder %v1161, 0
        %vm1164 = vcmp.ge.s32.totalorder %v1162, 0
        %vm1165 = vcmp.lt.s32.totalorder %v1161, 16
        %vm1166 = vcmp.lt.s32.totalorder %v1162, 16
        %vm1167 = vmand %vm1163, %vm1165
        %vm1168 = vmand %vm1164, %vm1166
        %v1169 = vsel %vm1167, %v1157, 0.0
        %v1170 = vsel %vm1168, %v1160, 0.0
        %v1171 = vadd.f32 %v548, %v655
        %v1172 = vadd.f32 %v549, %v656
        %v1173 = vadd.f32 %v762, %v848
        %v1174 = vadd.f32 %v763, %v849
        %v1175 = vadd.f32 %v955, %v1062
        %v1176 = vadd.f32 %v956, %v1063
        %v1177 = vadd.f32 %v1171, %v1173
        %v1178 = vadd.f32 %v1172, %v1174
        %v1179 = vadd.f32 %v1175, %v1169
        %v1180 = vadd.f32 %v1176, %v1170
        %v1181 = vadd.f32 %v1177, %v1179
        %v1182 = vadd.f32 %v1178, %v1180
        %v1183 = vxor.u32 %v1181, 2147483648
        %v1184 = vxor.u32 %v1182, 2147483648
        %v1185 = vmul.f32 %v1183, 1.442695
        %v1186 = vpow.pop %v1185
        %v1187 = vmul.f32 %v1184, 1.442695
        %v1188 = vpow.pop %v1187
        %v1189 = vadd.f32 %v1186, 1.0
        %v1190 = vadd.f32 %v1188, 1.0
        %v1191 = vrcp.pop %v1189
        %v1192 = vmul.f32 1.0, %v1191
        %v1193 = vrcp.pop %v1190
        %v1194 = vmul.f32 1.0, %v1193
        %v1195 = vlaneseq
        %v1196 = vshrl.u32 %v1195, 7
        %v1197 = vsub.s32 0, %v1196
        %v1198 = vrot.slane %v1192, %v1197
        %v1199 = vlaneseq
        %v1200 = vshrl.u32 %v1199, 7
        %v1201 = vsub.s32 0, %v1200
        %v1202 = vrot.slane %v1194, %v1201
        %v1203 = vmul.f32 %v275, %v1198
        %v1204 = vmul.f32 %v276, %v1202
        %v1205 = vmul.f32 %v277, %v1198
        %v1206 = vmul.f32 %v278, %v1202
        %1207 = vst [vmem:[%s197] sm:$0xff] %v1203
        %1208 = vst [vmem:[%s197 + $0x8] sm:$0xff] %v1204
        %1209 = vst [vmem:[%s197 + $0x10] sm:$0xff] %v1205
        %1210 = vst [vmem:[%s197 + $0x18] sm:$0xff] %v1206
        %p1211 = scmp.lt.s32.totalorder %s16, 1
        %s1212 = scalar_select %p1211, %s16, 1
        %s1213 = smul.addr %s1212, 4
        %s1214 = smul.addr %s1213, 8
        %s1215 = scalar_lea.vmem %s3, %s1214
        // Predicated region
        $region41: #{cbam_forward.1} parent=31 // pred_check
          %p1216 = pneg %p102
        $region42: #{cbam_forward.1} parent=31 // pred_check_branch
          %1218 = sbr.rel (%p1216) target = $region44
        $region43: #{cbam_forward.1} parent=31 // pred_region
          _
        $region44: #{cbam_forward.1} parent=31 // pred_fallthru
          _
      $region32: #{cbam_forward.1} parent=5 // pred_fallthru
        _
      %p1219 = scmp.le.s32.totalorder 2, %s11
      // Predicated region
      $region45: #{cbam_forward.1} parent=5 // pred_check
        %p1220 = pneg %p1219
      $region46: #{cbam_forward.1} parent=5 // pred_check_branch
        %1222 = sbr.rel (%p1220) target = $region48
      $region47: #{cbam_forward.1} parent=5 // pred_region
        %s1223 = ssub.s32 %s11, 2
        // Predicated region
        $region49: #{cbam_forward.1} parent=47 // pred_check
          %p1224 = pneg %p108
        $region50: #{cbam_forward.1} parent=47 // pred_check_branch
          %1226 = sbr.rel (%p1224) target = $region52
        $region51: #{cbam_forward.1} parent=47 // pred_region
          %p1227 = scmp.lt.s32.totalorder %s17, 1
          %s1228 = scalar_select %p1227, %s17, 1
          %s1229 = smul.addr %s1228, 4
          %s1230 = smul.addr %s1229, 8
          %s1231 = scalar_lea.vmem %s3, %s1230
        $region52: #{cbam_forward.1} parent=47 // pred_fallthru
          _
      $region48: #{cbam_forward.1} parent=5 // pred_fallthru
        _
    $region6: #{cbam_forward.1} parent=1 // loop_footer
      %s15 = sadd.s32 1, %s11
    $region7: #{cbam_forward.1} parent=1 // loop_footer_branch
      %10 = sbr.rel target = $region3
    $region8: #{cbam_forward.1} parent=1 // loop_exit
      _
    %1232 = vsyncpa [#allocation3], 1
    %s1233 = scalar_lea.sflag [#allocation3], 1
    %1234 = vsyncpa %s1233, 1
    %1235 = vsyncpa [#allocation5], 1

</llo_original>
